<compile_context>
chip_gen: v7x
topology: tpu7x:2x2x1
jax: 0.10.0
libtpu: 0.0.40
codegen_flags: <defaults>
</compile_context>

<pallas_src>
import functools
import math

import jax
import jax.numpy as jnp
import numpy as np
from jax.experimental import pallas as pl
from jax.experimental.pallas import tpu as pltpu


# ----------------------------- Pallas kernel ------------------------------

def attention_kernel(x_ref, w_qkv_ref, b_qkv_ref, w_proj_ref, b_proj_ref,
                     o_ref, y_ref, *, n_head, batch, seq):
    # x_ref      : (B*T, C)   flattened token slab
    # w_qkv_ref  : (C, 3C)    c_attn weight, already (in, out) layout
    # b_qkv_ref  : (1, 3C)
    # w_proj_ref : (C, C)     c_proj weight, (in, out) layout
    # b_proj_ref : (1, C)
    # o_ref      : (B*T, C)
    # y_ref      : (B*T, C)   VMEM scratch slab for merged-head attention output
    _, C = x_ref.shape
    D = C // n_head
    scale = 1.0 / math.sqrt(D)

    x = x_ref[...]                                                   # (B*T, C)

    # One fused qkv projection over ALL B*T rows (single MXU pass) + bias.
    qkv = jnp.dot(x, w_qkv_ref[...], preferred_element_type=jnp.float32)
    qkv = qkv + b_qkv_ref[...]                                       # (B*T, 3C)

    # Fold the softmax scale into q: O(B*T*C) instead of scaling the (T,T) scores.
    q = qkv[:, 0 * C:1 * C] * scale
    k = qkv[:, 1 * C:2 * C]
    v = qkv[:, 2 * C:3 * C]

    # Per-(batch, head) scaled dot-product attention (no causal mask, matching
    # F.scaled_dot_product_attention defaults).  Each head's (T, D) result is
    # written directly into the scratch slab at a static column offset -- no
    # live list of partials, no lane-axis concatenate.
    for b in range(batch):
        rows = slice(b * seq, (b + 1) * seq)
        for h in range(n_head):
            cols = slice(h * D, (h + 1) * D)
            qh = q[rows, cols]                                       # (T, D) pre-scaled
            kh = k[rows, cols]
            vh = v[rows, cols]
            s = jnp.dot(qh, kh.T, preferred_element_type=jnp.float32)   # (T, T)
            m = jnp.max(s, axis=-1, keepdims=True)
            p = jnp.exp(s - m)
            l = jnp.sum(p, axis=-1, keepdims=True)
            yh = jnp.dot(p, vh, preferred_element_type=jnp.float32)     # (T, D)
            # Normalize AFTER the PV matmul: O(T*D) multiply, not an O(T*T) divide.
            # pl.reciprocal exact mode keeps the 1e-4 tolerance vs the f32 reference.
            y_ref[rows, cols] = yh * pl.reciprocal(l)

    # Output projection over all B*T rows, written straight to the output block.
    out = jnp.dot(y_ref[...], w_proj_ref[...], preferred_element_type=jnp.float32)
    o_ref[...] = out + b_proj_ref[...]


# ----------------------------- wrapper -------------------------------------

def causal_self_attention(params, x, *, n_head):
    B, T, C = x.shape
    assert C % n_head == 0
    BT = B * T
    x_flat = x.reshape(BT, C)          # free reshape: lane (feature) dim unchanged

    kernel = functools.partial(attention_kernel, n_head=n_head, batch=B, seq=T)

    # Advisory cost hint so XLA schedules neighbours around this tiny custom call.
    flops = (2 * BT * C * 3 * C          # qkv projection
             + 4 * B * T * T * C         # QK^T + PV over all heads
             + 2 * BT * C * C)           # output projection
    transcendentals = B * n_head * T * T # exp in softmax
    bytes_accessed = 4 * (x_flat.size
                          + params['w_attn'].size + params['b_attn'].size
                          + params['w_proj'].size + params['b_proj'].size
                          + BT * C)

    out_flat = pl.pallas_call(
        kernel,
        out_shape=jax.ShapeDtypeStruct((BT, C), jnp.float32),
        # Single fused step: optimal on v5e/v6e at these shapes.
        # TODO(synk): for large shapes / v7x use a (batch*head, q-tile) parallel grid.
        grid=(1,),
        in_specs=[
            pl.BlockSpec((BT, C), lambda i: (0, 0)),       # x slab
            pl.BlockSpec((C, 3 * C), lambda i: (0, 0)),    # weights: VMEM resident
            pl.BlockSpec((1, 3 * C), lambda i: (0, 0)),
            pl.BlockSpec((C, C), lambda i: (0, 0)),
            pl.BlockSpec((1, C), lambda i: (0, 0)),
        ],
        out_specs=pl.BlockSpec((BT, C), lambda i: (0, 0)),
        scratch_shapes=[pltpu.VMEM((BT, C), jnp.float32)],   # merged-head slab
        compiler_params=pltpu.CompilerParams(
            dimension_semantics=("arbitrary",),
        ),
        cost_estimate=pl.CostEstimate(flops=flops,
                                      transcendentals=transcendentals,
                                      bytes_accessed=bytes_accessed),
    )(x_flat, params['w_attn'], params['b_attn'], params['w_proj'], params['b_proj'])
    return out_flat.reshape(B, T, C)


# ----------------------------- params & reference ---------------------------

def init_params(key, n_embd):
    # Weights stored in (in, out) layout == PyTorch nn.Linear weight transposed,
    # so the kernel never transposes at runtime.  Biases stored 2-D (1, out).
    k1, k2, k3, k4 = jax.random.split(key, 4)
    std = 0.02
    return dict(
        w_attn=std * jax.random.normal(k1, (n_embd, 3 * n_embd), jnp.float32),
        b_attn=std * jax.random.normal(k2, (1, 3 * n_embd), jnp.float32),
        w_proj=std * jax.random.normal(k3, (n_embd, n_embd), jnp.float32),
        b_proj=std * jax.random.normal(k4, (1, n_embd), jnp.float32),
    )


def reference_forward(params, x, n_head):
    """Pure-JAX reference matching the PyTorch forward (no causal mask, eval mode)."""
    B, T, C = x.shape
    D = C // n_head
    qkv = x @ params['w_attn'] + params['b_attn']
    q, k, v = jnp.split(qkv, 3, axis=-1)
    q = q.reshape(B, T, n_head, D).transpose(0, 2, 1, 3)
    k = k.reshape(B, T, n_head, D).transpose(0, 2, 1, 3)
    v = v.reshape(B, T, n_head, D).transpose(0, 2, 1, 3)
    s = jnp.einsum('bhqd,bhkd->bhqk', q, k) / jnp.sqrt(jnp.float32(D))
    p = jax.nn.softmax(s, axis=-1)
    y = jnp.einsum('bhqk,bhkd->bhqd', p, v)
    y = y.transpose(0, 2, 1, 3).reshape(B, T, C)
    return y @ params['w_proj'] + params['b_proj']


# ----------------------------- main ----------------------------------------

if __name__ == "__main__":
    B, T, C, H = 2, 8, 32, 4          # small shapes consistent with the module

    key = jax.random.PRNGKey(0)
    kp, kx = jax.random.split(key)
    params = init_params(kp, C)
    x = jax.random.normal(kx, (B, T, C), jnp.float32)

    fwd = jax.jit(functools.partial(causal_self_attention, n_head=H))
    out = fwd(params, x)
    out = jax.block_until_ready(out)

    ref = reference_forward(params, x, H)
    np.testing.assert_allclose(np.asarray(out), np.asarray(ref), rtol=1e-4, atol=1e-4)
    print("KERNEL_OK")
</pallas_src>

<mosaic_0001>
module attributes {stable_mosaic.version = 11 : i64} {
  func.func @attention_kernel(%arg0: i32, %arg1: memref<16x32xf32, #tpu.memory_space<vmem>>, %arg2: memref<32x96xf32, #tpu.memory_space<vmem>>, %arg3: memref<1x96xf32, #tpu.memory_space<vmem>>, %arg4: memref<32x32xf32, #tpu.memory_space<vmem>>, %arg5: memref<1x32xf32, #tpu.memory_space<vmem>>, %arg6: memref<16x32xf32, #tpu.memory_space<vmem>>, %arg7: memref<16x32xf32, #tpu.memory_space<vmem>>) attributes {dimension_semantics = [#tpu.dimension_semantics<arbitrary>], iteration_bounds = array<i64: 1>, scalar_prefetch = 0 : i64, scratch_operands = 1 : i64, tpu.core_type = #tpu.core_type<tc>, window_params = [{pipeline_mode = #tpu.pipeline_mode<synchronous>, transform_indices = @transform_0, window_bounds = array<i64: 16, 32>}, {pipeline_mode = #tpu.pipeline_mode<synchronous>, transform_indices = @transform_1, window_bounds = array<i64: 32, 96>}, {pipeline_mode = #tpu.pipeline_mode<synchronous>, transform_indices = @transform_2, window_bounds = array<i64: 1, 96>}, {pipeline_mode = #tpu.pipeline_mode<synchronous>, transform_indices = @transform_3, window_bounds = array<i64: 32, 32>}, {pipeline_mode = #tpu.pipeline_mode<synchronous>, transform_indices = @transform_4, window_bounds = array<i64: 1, 32>}, {pipeline_mode = #tpu.pipeline_mode<synchronous>, transform_indices = @transform_5, window_bounds = array<i64: 16, 32>}]} {
    %c0 = arith.constant 0 : index
    %c0_0 = arith.constant 0 : index
    %0 = vector.load %arg1[%c0, %c0_0] : memref<16x32xf32, #tpu.memory_space<vmem>>, vector<16x32xf32>
    %c0_1 = arith.constant 0 : index
    %c0_2 = arith.constant 0 : index
    %1 = vector.load %arg2[%c0_1, %c0_2] : memref<32x96xf32, #tpu.memory_space<vmem>>, vector<32x96xf32>
    %cst = arith.constant dense<0.000000e+00> : vector<16x96xf32>
    %2 = tpu.matmul %0, %1, %cst {dimension_numbers = #tpu.dot_dimension_numbers<[1], [0], [0], [1], [0, 0, 1, 1], [], []>} : vector<16x32xf32>, vector<32x96xf32>, vector<16x96xf32> -> vector<16x96xf32>
    %c0_3 = arith.constant 0 : index
    %c0_4 = arith.constant 0 : index
    %3 = vector.load %arg3[%c0_3, %c0_4] : memref<1x96xf32, #tpu.memory_space<vmem>>, vector<1x96xf32>
    %4 = vector.broadcast %3 : vector<1x96xf32> to vector<16x96xf32>
    %5 = arith.addf %2, %4 : vector<16x96xf32>
    %6 = vector.extract_strided_slice %5 {offsets = [0, 0], sizes = [16, 32], strides = [1, 1]} : vector<16x96xf32> to vector<16x32xf32>
    %cst_5 = arith.constant 0.353553385 : f32
    %7 = vector.broadcast %cst_5 : f32 to vector<16x32xf32>
    %8 = arith.mulf %6, %7 : vector<16x32xf32>
    %9 = vector.extract_strided_slice %5 {offsets = [0, 32], sizes = [16, 32], strides = [1, 1]} : vector<16x96xf32> to vector<16x32xf32>
    %10 = vector.extract_strided_slice %5 {offsets = [0, 64], sizes = [16, 32], strides = [1, 1]} : vector<16x96xf32> to vector<16x32xf32>
    %11 = vector.extract_strided_slice %8 {offsets = [0, 0], sizes = [8, 8], strides = [1, 1]} : vector<16x32xf32> to vector<8x8xf32>
    %12 = vector.extract_strided_slice %9 {offsets = [0, 0], sizes = [8, 8], strides = [1, 1]} : vector<16x32xf32> to vector<8x8xf32>
    %13 = vector.extract_strided_slice %10 {offsets = [0, 0], sizes = [8, 8], strides = [1, 1]} : vector<16x32xf32> to vector<8x8xf32>
    %14 = tpu.transpose %12, [1, 0] : vector<8x8xf32> -> vector<8x8xf32>
    %cst_6 = arith.constant dense<0.000000e+00> : vector<8x8xf32>
    %15 = tpu.matmul %11, %14, %cst_6 {dimension_numbers = #tpu.dot_dimension_numbers<[1], [0], [0], [1], [0, 0, 1, 1], [], []>} : vector<8x8xf32>, vector<8x8xf32>, vector<8x8xf32> -> vector<8x8xf32>
    %cst_7 = arith.constant dense<0xFF800000> : vector<8xf32>
    %16 = vector.multi_reduction <maximumf>, %15, %cst_7 [1] : vector<8x8xf32> to vector<8xf32>
    %17 = vector.shape_cast %16 : vector<8xf32> to vector<8x1xf32>
    %18 = vector.broadcast %17 : vector<8x1xf32> to vector<8x8xf32>
    %19 = arith.subf %15, %18 : vector<8x8xf32>
    %20 = math.exp %19 : vector<8x8xf32>
    %cst_8 = arith.constant dense<0.000000e+00> : vector<8xf32>
    %21 = vector.multi_reduction <add>, %20, %cst_8 [1] : vector<8x8xf32> to vector<8xf32>
    %22 = vector.shape_cast %21 : vector<8xf32> to vector<8x1xf32>
    %cst_9 = arith.constant dense<0.000000e+00> : vector<8x8xf32>
    %23 = tpu.matmul %20, %13, %cst_9 {dimension_numbers = #tpu.dot_dimension_numbers<[1], [0], [0], [1], [0, 0, 1, 1], [], []>} : vector<8x8xf32>, vector<8x8xf32>, vector<8x8xf32> -> vector<8x8xf32>
    %24 = tpu.reciprocal %22 : vector<8x1xf32> -> vector<8x1xf32>
    %25 = vector.broadcast %24 : vector<8x1xf32> to vector<8x8xf32>
    %26 = arith.mulf %23, %25 : vector<8x8xf32>
    %c0_10 = arith.constant 0 : index
    %c0_11 = arith.constant 0 : index
    %27 = vector.load %arg7[%c0_10, %c0_11] : memref<16x32xf32, #tpu.memory_space<vmem>>, vector<8x8xf32>
    tpu.vector_store %arg7[%c0_10, %c0_11], %26 {strides = array<i32>} : memref<16x32xf32, #tpu.memory_space<vmem>>, vector<8x8xf32>,
    %28 = vector.extract_strided_slice %8 {offsets = [0, 8], sizes = [8, 8], strides = [1, 1]} : vector<16x32xf32> to vector<8x8xf32>
    %29 = vector.extract_strided_slice %9 {offsets = [0, 8], sizes = [8, 8], strides = [1, 1]} : vector<16x32xf32> to vector<8x8xf32>
    %30 = vector.extract_strided_slice %10 {offsets = [0, 8], sizes = [8, 8], strides = [1, 1]} : vector<16x32xf32> to vector<8x8xf32>
    %31 = tpu.transpose %29, [1, 0] : vector<8x8xf32> -> vector<8x8xf32>
    %cst_12 = arith.constant dense<0.000000e+00> : vector<8x8xf32>
    %32 = tpu.matmul %28, %31, %cst_12 {dimension_numbers = #tpu.dot_dimension_numbers<[1], [0], [0], [1], [0, 0, 1, 1], [], []>} : vector<8x8xf32>, vector<8x8xf32>, vector<8x8xf32> -> vector<8x8xf32>
    %cst_13 = arith.constant dense<0xFF800000> : vector<8xf32>
    %33 = vector.multi_reduction <maximumf>, %32, %cst_13 [1] : vector<8x8xf32> to vector<8xf32>
    %34 = vector.shape_cast %33 : vector<8xf32> to vector<8x1xf32>
    %35 = vector.broadcast %34 : vector<8x1xf32> to vector<8x8xf32>
    %36 = arith.subf %32, %35 : vector<8x8xf32>
    %37 = math.exp %36 : vector<8x8xf32>
    %cst_14 = arith.constant dense<0.000000e+00> : vector<8xf32>
    %38 = vector.multi_reduction <add>, %37, %cst_14 [1] : vector<8x8xf32> to vector<8xf32>
    %39 = vector.shape_cast %38 : vector<8xf32> to vector<8x1xf32>
    %cst_15 = arith.constant dense<0.000000e+00> : vector<8x8xf32>
    %40 = tpu.matmul %37, %30, %cst_15 {dimension_numbers = #tpu.dot_dimension_numbers<[1], [0], [0], [1], [0, 0, 1, 1], [], []>} : vector<8x8xf32>, vector<8x8xf32>, vector<8x8xf32> -> vector<8x8xf32>
    %41 = tpu.reciprocal %39 : vector<8x1xf32> -> vector<8x1xf32>
    %42 = vector.broadcast %41 : vector<8x1xf32> to vector<8x8xf32>
    %43 = arith.mulf %40, %42 : vector<8x8xf32>
    %c0_16 = arith.constant 0 : index
    %c8 = arith.constant 8 : index
    %44 = vector.load %arg7[%c0_16, %c8] : memref<16x32xf32, #tpu.memory_space<vmem>>, vector<8x8xf32>
    tpu.vector_store %arg7[%c0_16, %c8], %43 {strides = array<i32>} : memref<16x32xf32, #tpu.memory_space<vmem>>, vector<8x8xf32>,
    %45 = vector.extract_strided_slice %8 {offsets = [0, 16], sizes = [8, 8], strides = [1, 1]} : vector<16x32xf32> to vector<8x8xf32>
    %46 = vector.extract_strided_slice %9 {offsets = [0, 16], sizes = [8, 8], strides = [1, 1]} : vector<16x32xf32> to vector<8x8xf32>
    %47 = vector.extract_strided_slice %10 {offsets = [0, 16], sizes = [8, 8], strides = [1, 1]} : vector<16x32xf32> to vector<8x8xf32>
    %48 = tpu.transpose %46, [1, 0] : vector<8x8xf32> -> vector<8x8xf32>
    %cst_17 = arith.constant dense<0.000000e+00> : vector<8x8xf32>
    %49 = tpu.matmul %45, %48, %cst_17 {dimension_numbers = #tpu.dot_dimension_numbers<[1], [0], [0], [1], [0, 0, 1, 1], [], []>} : vector<8x8xf32>, vector<8x8xf32>, vector<8x8xf32> -> vector<8x8xf32>
    %cst_18 = arith.constant dense<0xFF800000> : vector<8xf32>
    %50 = vector.multi_reduction <maximumf>, %49, %cst_18 [1] : vector<8x8xf32> to vector<8xf32>
    %51 = vector.shape_cast %50 : vector<8xf32> to vector<8x1xf32>
    %52 = vector.broadcast %51 : vector<8x1xf32> to vector<8x8xf32>
    %53 = arith.subf %49, %52 : vector<8x8xf32>
    %54 = math.exp %53 : vector<8x8xf32>
    %cst_19 = arith.constant dense<0.000000e+00> : vector<8xf32>
    %55 = vector.multi_reduction <add>, %54, %cst_19 [1] : vector<8x8xf32> to vector<8xf32>
    %56 = vector.shape_cast %55 : vector<8xf32> to vector<8x1xf32>
    %cst_20 = arith.constant dense<0.000000e+00> : vector<8x8xf32>
    %57 = tpu.matmul %54, %47, %cst_20 {dimension_numbers = #tpu.dot_dimension_numbers<[1], [0], [0], [1], [0, 0, 1, 1], [], []>} : vector<8x8xf32>, vector<8x8xf32>, vector<8x8xf32> -> vector<8x8xf32>
    %58 = tpu.reciprocal %56 : vector<8x1xf32> -> vector<8x1xf32>
    %59 = vector.broadcast %58 : vector<8x1xf32> to vector<8x8xf32>
    %60 = arith.mulf %57, %59 : vector<8x8xf32>
    %c0_21 = arith.constant 0 : index
    %c16 = arith.constant 16 : index
    %61 = vector.load %arg7[%c0_21, %c16] : memref<16x32xf32, #tpu.memory_space<vmem>>, vector<8x8xf32>
    tpu.vector_store %arg7[%c0_21, %c16], %60 {strides = array<i32>} : memref<16x32xf32, #tpu.memory_space<vmem>>, vector<8x8xf32>,
    %62 = vector.extract_strided_slice %8 {offsets = [0, 24], sizes = [8, 8], strides = [1, 1]} : vector<16x32xf32> to vector<8x8xf32>
    %63 = vector.extract_strided_slice %9 {offsets = [0, 24], sizes = [8, 8], strides = [1, 1]} : vector<16x32xf32> to vector<8x8xf32>
    %64 = vector.extract_strided_slice %10 {offsets = [0, 24], sizes = [8, 8], strides = [1, 1]} : vector<16x32xf32> to vector<8x8xf32>
    %65 = tpu.transpose %63, [1, 0] : vector<8x8xf32> -> vector<8x8xf32>
    %cst_22 = arith.constant dense<0.000000e+00> : vector<8x8xf32>
    %66 = tpu.matmul %62, %65, %cst_22 {dimension_numbers = #tpu.dot_dimension_numbers<[1], [0], [0], [1], [0, 0, 1, 1], [], []>} : vector<8x8xf32>, vector<8x8xf32>, vector<8x8xf32> -> vector<8x8xf32>
    %cst_23 = arith.constant dense<0xFF800000> : vector<8xf32>
    %67 = vector.multi_reduction <maximumf>, %66, %cst_23 [1] : vector<8x8xf32> to vector<8xf32>
    %68 = vector.shape_cast %67 : vector<8xf32> to vector<8x1xf32>
    %69 = vector.broadcast %68 : vector<8x1xf32> to vector<8x8xf32>
    %70 = arith.subf %66, %69 : vector<8x8xf32>
    %71 = math.exp %70 : vector<8x8xf32>
    %cst_24 = arith.constant dense<0.000000e+00> : vector<8xf32>
    %72 = vector.multi_reduction <add>, %71, %cst_24 [1] : vector<8x8xf32> to vector<8xf32>
    %73 = vector.shape_cast %72 : vector<8xf32> to vector<8x1xf32>
    %cst_25 = arith.constant dense<0.000000e+00> : vector<8x8xf32>
    %74 = tpu.matmul %71, %64, %cst_25 {dimension_numbers = #tpu.dot_dimension_numbers<[1], [0], [0], [1], [0, 0, 1, 1], [], []>} : vector<8x8xf32>, vector<8x8xf32>, vector<8x8xf32> -> vector<8x8xf32>
    %75 = tpu.reciprocal %73 : vector<8x1xf32> -> vector<8x1xf32>
    %76 = vector.broadcast %75 : vector<8x1xf32> to vector<8x8xf32>
    %77 = arith.mulf %74, %76 : vector<8x8xf32>
    %c0_26 = arith.constant 0 : index
    %c24 = arith.constant 24 : index
    %78 = vector.load %arg7[%c0_26, %c24] : memref<16x32xf32, #tpu.memory_space<vmem>>, vector<8x8xf32>
    tpu.vector_store %arg7[%c0_26, %c24], %77 {strides = array<i32>} : memref<16x32xf32, #tpu.memory_space<vmem>>, vector<8x8xf32>,
    %79 = vector.extract_strided_slice %8 {offsets = [8, 0], sizes = [8, 8], strides = [1, 1]} : vector<16x32xf32> to vector<8x8xf32>
    %80 = vector.extract_strided_slice %9 {offsets = [8, 0], sizes = [8, 8], strides = [1, 1]} : vector<16x32xf32> to vector<8x8xf32>
    %81 = vector.extract_strided_slice %10 {offsets = [8, 0], sizes = [8, 8], strides = [1, 1]} : vector<16x32xf32> to vector<8x8xf32>
    %82 = tpu.transpose %80, [1, 0] : vector<8x8xf32> -> vector<8x8xf32>
    %cst_27 = arith.constant dense<0.000000e+00> : vector<8x8xf32>
    %83 = tpu.matmul %79, %82, %cst_27 {dimension_numbers = #tpu.dot_dimension_numbers<[1], [0], [0], [1], [0, 0, 1, 1], [], []>} : vector<8x8xf32>, vector<8x8xf32>, vector<8x8xf32> -> vector<8x8xf32>
    %cst_28 = arith.constant dense<0xFF800000> : vector<8xf32>
    %84 = vector.multi_reduction <maximumf>, %83, %cst_28 [1] : vector<8x8xf32> to vector<8xf32>
    %85 = vector.shape_cast %84 : vector<8xf32> to vector<8x1xf32>
    %86 = vector.broadcast %85 : vector<8x1xf32> to vector<8x8xf32>
    %87 = arith.subf %83, %86 : vector<8x8xf32>
    %88 = math.exp %87 : vector<8x8xf32>
    %cst_29 = arith.constant dense<0.000000e+00> : vector<8xf32>
    %89 = vector.multi_reduction <add>, %88, %cst_29 [1] : vector<8x8xf32> to vector<8xf32>
    %90 = vector.shape_cast %89 : vector<8xf32> to vector<8x1xf32>
    %cst_30 = arith.constant dense<0.000000e+00> : vector<8x8xf32>
    %91 = tpu.matmul %88, %81, %cst_30 {dimension_numbers = #tpu.dot_dimension_numbers<[1], [0], [0], [1], [0, 0, 1, 1], [], []>} : vector<8x8xf32>, vector<8x8xf32>, vector<8x8xf32> -> vector<8x8xf32>
    %92 = tpu.reciprocal %90 : vector<8x1xf32> -> vector<8x1xf32>
    %93 = vector.broadcast %92 : vector<8x1xf32> to vector<8x8xf32>
    %94 = arith.mulf %91, %93 : vector<8x8xf32>
    %c8_31 = arith.constant 8 : index
    %c0_32 = arith.constant 0 : index
    %95 = vector.load %arg7[%c8_31, %c0_32] : memref<16x32xf32, #tpu.memory_space<vmem>>, vector<8x8xf32>
    tpu.vector_store %arg7[%c8_31, %c0_32], %94 {strides = array<i32>} : memref<16x32xf32, #tpu.memory_space<vmem>>, vector<8x8xf32>,
    %96 = vector.extract_strided_slice %8 {offsets = [8, 8], sizes = [8, 8], strides = [1, 1]} : vector<16x32xf32> to vector<8x8xf32>
    %97 = vector.extract_strided_slice %9 {offsets = [8, 8], sizes = [8, 8], strides = [1, 1]} : vector<16x32xf32> to vector<8x8xf32>
    %98 = vector.extract_strided_slice %10 {offsets = [8, 8], sizes = [8, 8], strides = [1, 1]} : vector<16x32xf32> to vector<8x8xf32>
    %99 = tpu.transpose %97, [1, 0] : vector<8x8xf32> -> vector<8x8xf32>
    %cst_33 = arith.constant dense<0.000000e+00> : vector<8x8xf32>
    %100 = tpu.matmul %96, %99, %cst_33 {dimension_numbers = #tpu.dot_dimension_numbers<[1], [0], [0], [1], [0, 0, 1, 1], [], []>} : vector<8x8xf32>, vector<8x8xf32>, vector<8x8xf32> -> vector<8x8xf32>
    %cst_34 = arith.constant dense<0xFF800000> : vector<8xf32>
    %101 = vector.multi_reduction <maximumf>, %100, %cst_34 [1] : vector<8x8xf32> to vector<8xf32>
    %102 = vector.shape_cast %101 : vector<8xf32> to vector<8x1xf32>
    %103 = vector.broadcast %102 : vector<8x1xf32> to vector<8x8xf32>
    %104 = arith.subf %100, %103 : vector<8x8xf32>
    %105 = math.exp %104 : vector<8x8xf32>
    %cst_35 = arith.constant dense<0.000000e+00> : vector<8xf32>
    %106 = vector.multi_reduction <add>, %105, %cst_35 [1] : vector<8x8xf32> to vector<8xf32>
    %107 = vector.shape_cast %106 : vector<8xf32> to vector<8x1xf32>
    %cst_36 = arith.constant dense<0.000000e+00> : vector<8x8xf32>
    %108 = tpu.matmul %105, %98, %cst_36 {dimension_numbers = #tpu.dot_dimension_numbers<[1], [0], [0], [1], [0, 0, 1, 1], [], []>} : vector<8x8xf32>, vector<8x8xf32>, vector<8x8xf32> -> vector<8x8xf32>
    %109 = tpu.reciprocal %107 : vector<8x1xf32> -> vector<8x1xf32>
    %110 = vector.broadcast %109 : vector<8x1xf32> to vector<8x8xf32>
    %111 = arith.mulf %108, %110 : vector<8x8xf32>
    %c8_37 = arith.constant 8 : index
    %c8_38 = arith.constant 8 : index
    %112 = vector.load %arg7[%c8_37, %c8_38] : memref<16x32xf32, #tpu.memory_space<vmem>>, vector<8x8xf32>
    tpu.vector_store %arg7[%c8_37, %c8_38], %111 {strides = array<i32>} : memref<16x32xf32, #tpu.memory_space<vmem>>, vector<8x8xf32>,
    %113 = vector.extract_strided_slice %8 {offsets = [8, 16], sizes = [8, 8], strides = [1, 1]} : vector<16x32xf32> to vector<8x8xf32>
    %114 = vector.extract_strided_slice %9 {offsets = [8, 16], sizes = [8, 8], strides = [1, 1]} : vector<16x32xf32> to vector<8x8xf32>
    %115 = vector.extract_strided_slice %10 {offsets = [8, 16], sizes = [8, 8], strides = [1, 1]} : vector<16x32xf32> to vector<8x8xf32>
    %116 = tpu.transpose %114, [1, 0] : vector<8x8xf32> -> vector<8x8xf32>
    %cst_39 = arith.constant dense<0.000000e+00> : vector<8x8xf32>
    %117 = tpu.matmul %113, %116, %cst_39 {dimension_numbers = #tpu.dot_dimension_numbers<[1], [0], [0], [1], [0, 0, 1, 1], [], []>} : vector<8x8xf32>, vector<8x8xf32>, vector<8x8xf32> -> vector<8x8xf32>
    %cst_40 = arith.constant dense<0xFF800000> : vector<8xf32>
    %118 = vector.multi_reduction <maximumf>, %117, %cst_40 [1] : vector<8x8xf32> to vector<8xf32>
    %119 = vector.shape_cast %118 : vector<8xf32> to vector<8x1xf32>
    %120 = vector.broadcast %119 : vector<8x1xf32> to vector<8x8xf32>
    %121 = arith.subf %117, %120 : vector<8x8xf32>
    %122 = math.exp %121 : vector<8x8xf32>
    %cst_41 = arith.constant dense<0.000000e+00> : vector<8xf32>
    %123 = vector.multi_reduction <add>, %122, %cst_41 [1] : vector<8x8xf32> to vector<8xf32>
    %124 = vector.shape_cast %123 : vector<8xf32> to vector<8x1xf32>
    %cst_42 = arith.constant dense<0.000000e+00> : vector<8x8xf32>
    %125 = tpu.matmul %122, %115, %cst_42 {dimension_numbers = #tpu.dot_dimension_numbers<[1], [0], [0], [1], [0, 0, 1, 1], [], []>} : vector<8x8xf32>, vector<8x8xf32>, vector<8x8xf32> -> vector<8x8xf32>
    %126 = tpu.reciprocal %124 : vector<8x1xf32> -> vector<8x1xf32>
    %127 = vector.broadcast %126 : vector<8x1xf32> to vector<8x8xf32>
    %128 = arith.mulf %125, %127 : vector<8x8xf32>
    %c8_43 = arith.constant 8 : index
    %c16_44 = arith.constant 16 : index
    %129 = vector.load %arg7[%c8_43, %c16_44] : memref<16x32xf32, #tpu.memory_space<vmem>>, vector<8x8xf32>
    tpu.vector_store %arg7[%c8_43, %c16_44], %128 {strides = array<i32>} : memref<16x32xf32, #tpu.memory_space<vmem>>, vector<8x8xf32>,
    %130 = vector.extract_strided_slice %8 {offsets = [8, 24], sizes = [8, 8], strides = [1, 1]} : vector<16x32xf32> to vector<8x8xf32>
    %131 = vector.extract_strided_slice %9 {offsets = [8, 24], sizes = [8, 8], strides = [1, 1]} : vector<16x32xf32> to vector<8x8xf32>
    %132 = vector.extract_strided_slice %10 {offsets = [8, 24], sizes = [8, 8], strides = [1, 1]} : vector<16x32xf32> to vector<8x8xf32>
    %133 = tpu.transpose %131, [1, 0] : vector<8x8xf32> -> vector<8x8xf32>
    %cst_45 = arith.constant dense<0.000000e+00> : vector<8x8xf32>
    %134 = tpu.matmul %130, %133, %cst_45 {dimension_numbers = #tpu.dot_dimension_numbers<[1], [0], [0], [1], [0, 0, 1, 1], [], []>} : vector<8x8xf32>, vector<8x8xf32>, vector<8x8xf32> -> vector<8x8xf32>
    %cst_46 = arith.constant dense<0xFF800000> : vector<8xf32>
    %135 = vector.multi_reduction <maximumf>, %134, %cst_46 [1] : vector<8x8xf32> to vector<8xf32>
    %136 = vector.shape_cast %135 : vector<8xf32> to vector<8x1xf32>
    %137 = vector.broadcast %136 : vector<8x1xf32> to vector<8x8xf32>
    %138 = arith.subf %134, %137 : vector<8x8xf32>
    %139 = math.exp %138 : vector<8x8xf32>
    %cst_47 = arith.constant dense<0.000000e+00> : vector<8xf32>
    %140 = vector.multi_reduction <add>, %139, %cst_47 [1] : vector<8x8xf32> to vector<8xf32>
    %141 = vector.shape_cast %140 : vector<8xf32> to vector<8x1xf32>
    %cst_48 = arith.constant dense<0.000000e+00> : vector<8x8xf32>
    %142 = tpu.matmul %139, %132, %cst_48 {dimension_numbers = #tpu.dot_dimension_numbers<[1], [0], [0], [1], [0, 0, 1, 1], [], []>} : vector<8x8xf32>, vector<8x8xf32>, vector<8x8xf32> -> vector<8x8xf32>
    %143 = tpu.reciprocal %141 : vector<8x1xf32> -> vector<8x1xf32>
    %144 = vector.broadcast %143 : vector<8x1xf32> to vector<8x8xf32>
    %145 = arith.mulf %142, %144 : vector<8x8xf32>
    %c8_49 = arith.constant 8 : index
    %c24_50 = arith.constant 24 : index
    %146 = vector.load %arg7[%c8_49, %c24_50] : memref<16x32xf32, #tpu.memory_space<vmem>>, vector<8x8xf32>
    tpu.vector_store %arg7[%c8_49, %c24_50], %145 {strides = array<i32>} : memref<16x32xf32, #tpu.memory_space<vmem>>, vector<8x8xf32>,
    %c0_51 = arith.constant 0 : index
    %c0_52 = arith.constant 0 : index
    %147 = vector.load %arg7[%c0_51, %c0_52] : memref<16x32xf32, #tpu.memory_space<vmem>>, vector<16x32xf32>
    %c0_53 = arith.constant 0 : index
    %c0_54 = arith.constant 0 : index
    %148 = vector.load %arg4[%c0_53, %c0_54] : memref<32x32xf32, #tpu.memory_space<vmem>>, vector<32x32xf32>
    %cst_55 = arith.constant dense<0.000000e+00> : vector<16x32xf32>
    %149 = tpu.matmul %147, %148, %cst_55 {dimension_numbers = #tpu.dot_dimension_numbers<[1], [0], [0], [1], [0, 0, 1, 1], [], []>} : vector<16x32xf32>, vector<32x32xf32>, vector<16x32xf32> -> vector<16x32xf32>
    %c0_56 = arith.constant 0 : index
    %c0_57 = arith.constant 0 : index
    %150 = vector.load %arg5[%c0_56, %c0_57] : memref<1x32xf32, #tpu.memory_space<vmem>>, vector<1x32xf32>
    %151 = vector.broadcast %150 : vector<1x32xf32> to vector<16x32xf32>
    %152 = arith.addf %149, %151 : vector<16x32xf32>
    %c0_58 = arith.constant 0 : index
    %c0_59 = arith.constant 0 : index
    %153 = vector.load %arg6[%c0_58, %c0_59] : memref<16x32xf32, #tpu.memory_space<vmem>>, vector<16x32xf32>
    tpu.vector_store %arg6[%c0_58, %c0_59], %152 {strides = array<i32>} : memref<16x32xf32, #tpu.memory_space<vmem>>, vector<16x32xf32>,
    return
  }
  func.func @transform_0(%arg0: i32) -> (i32, i32) {
    %c0_i32 = arith.constant 0 : i32
    %c0_i32_0 = arith.constant 0 : i32
    %c0_i32_1 = arith.constant 0 : i32
    return %c0_i32, %c0_i32_0 : i32, i32
  }
  func.func @transform_1(%arg0: i32) -> (i32, i32) {
    %c0_i32 = arith.constant 0 : i32
    %c0_i32_0 = arith.constant 0 : i32
    %c0_i32_1 = arith.constant 0 : i32
    return %c0_i32, %c0_i32_0 : i32, i32
  }
  func.func @transform_2(%arg0: i32) -> (i32, i32) {
    %c0_i32 = arith.constant 0 : i32
    %c0_i32_0 = arith.constant 0 : i32
    %c0_i32_1 = arith.constant 0 : i32
    return %c0_i32, %c0_i32_0 : i32, i32
  }
  func.func @transform_3(%arg0: i32) -> (i32, i32) {
    %c0_i32 = arith.constant 0 : i32
    %c0_i32_0 = arith.constant 0 : i32
    %c0_i32_1 = arith.constant 0 : i32
    return %c0_i32, %c0_i32_0 : i32, i32
  }
  func.func @transform_4(%arg0: i32) -> (i32, i32) {
    %c0_i32 = arith.constant 0 : i32
    %c0_i32_0 = arith.constant 0 : i32
    %c0_i32_1 = arith.constant 0 : i32
    return %c0_i32, %c0_i32_0 : i32, i32
  }
  func.func @transform_5(%arg0: i32) -> (i32, i32) {
    %c0_i32 = arith.constant 0 : i32
    %c0_i32_0 = arith.constant 0 : i32
    %c0_i32_1 = arith.constant 0 : i32
    return %c0_i32, %c0_i32_0 : i32, i32
  }
}

</mosaic_0001>

<llo_original>
// kernel: causal_self_attention.1
$region0: #{causal_self_attention.1}
  #allocation0 [shape = 'u32[]', space=smem, size = 0x4, offset = 0x4, fixed_abs, tag = 'smem constant byte address 0x4 - core index']
  #allocation1 [shape = 'u32[144,128]{1,0:T(1,128)}', space=vmem, size = 0x12000, scoped, tag = 'internal scratch']
  #allocation2 [shape = 'f32[16,32]{1,0:T(8,128)}', space=vmem, size = 0x2000, scoped, tag = 'scratch operand']
  %s0 = inlined_call_operand.vmem [shape: f32[16,32], index: 0, kind: input, shape index: {}]
  %s1 = inlined_call_operand.hbm [shape: f32[32,96], index: 1, kind: input, shape index: {}]
  %s2 = inlined_call_operand.vmem [shape: f32[1,96], index: 2, kind: input, shape index: {}]
  %s3 = inlined_call_operand.hbm [shape: f32[32,32], index: 3, kind: input, shape index: {}]
  %s4 = inlined_call_operand.vmem [shape: f32[1,32], index: 4, kind: input, shape index: {}]
  %s5 = inlined_call_operand.hbm [shape: f32[16,32], index: 5, kind: output, shape index: {}]
  %s6 = sld [smem:[#allocation0]]
  $region38: #{causal_self_attention.1} parent=0
    _
  %s8 = ssub.s32 1, %s6
  %s9 = scalar_select 0, %s8, %s6
  $region1: #{causal_self_attention.1} parent=0
    #allocation3 [shape = 'u8[16384]{0}', space=vmem, size = 0x4000, scoped, tag = 'input window, operand 1, single buffered']
    #allocation4 [shape = 's32[1]{0}', space=sflag, size = 0x4, scoped, tag = 'scoped memory for causal_self_attention.1']
    #allocation5 [shape = 's32[1]{0}', space=sflag, size = 0x4, scoped, tag = 'scoped memory for causal_self_attention.1']
    #allocation6 [shape = 'u8[16384]{0}', space=vmem, size = 0x4000, scoped, tag = 'input window, operand 3, single buffered']
    #allocation7 [shape = 's32[1]{0}', space=sflag, size = 0x4, scoped, tag = 'scoped memory for causal_self_attention.1']
    #allocation8 [shape = 'u8[8192]{0}', space=vmem, size = 0x2000, scoped, tag = 'output window, operand 0, single buffered']
    %10 = vsyncpa [#allocation4], 0
    %11 = vsyncpa [#allocation7], 0
    %12 = vsyncpa [#allocation5], 0
    // Predicated region
    $region2: #{causal_self_attention.1} parent=1 // pred_check
      _
    $region3: #{causal_self_attention.1} parent=1 // pred_check_branch
      %14 = sbr.rel (0) target = $region5
    $region4: #{causal_self_attention.1} parent=1 // pred_region
      _
    $region5: #{causal_self_attention.1} parent=1 // pred_fallthru
      _
    // Predicated region
    $region6: #{causal_self_attention.1} parent=1 // pred_check
      _
    $region7: #{causal_self_attention.1} parent=1 // pred_check_branch
      %16 = sbr.rel (0) target = $region9
    $region8: #{causal_self_attention.1} parent=1 // pred_region
      %s18 = ssub.s32 512, 512
      %19 = vsyncadd [#allocation4], %s18
      %s20 = sshll.u32 [#allocation3], 4
      %s21 = int_to_ptr.vmem [resolvable:$true] %s20
      %26 = dma.hbm_to_vmem [thread:$0]  %s1, 512, %s21, [#allocation4], 128, 128, 8
    $region9: #{causal_self_attention.1} parent=1 // pred_fallthru
      _
    // Predicated region
    $region10: #{causal_self_attention.1} parent=1 // pred_check
      _
    $region11: #{causal_self_attention.1} parent=1 // pred_check_branch
      %28 = sbr.rel (0) target = $region13
    $region12: #{causal_self_attention.1} parent=1 // pred_region
      _
    $region13: #{causal_self_attention.1} parent=1 // pred_fallthru
      _
    // Predicated region
    $region14: #{causal_self_attention.1} parent=1 // pred_check
      _
    $region15: #{causal_self_attention.1} parent=1 // pred_check_branch
      %30 = sbr.rel (0) target = $region17
    $region16: #{causal_self_attention.1} parent=1 // pred_region
      %s32 = ssub.s32 512, 512
      %33 = vsyncadd [#allocation7], %s32
      %s34 = sshll.u32 [#allocation6], 4
      %s35 = int_to_ptr.vmem [resolvable:$true] %s34
      %40 = dma.hbm_to_vmem [thread:$0]  %s3, 512, %s35, [#allocation7], 128, 128, 8
    $region17: #{causal_self_attention.1} parent=1 // pred_fallthru
      _
    // Predicated region
    $region18: #{causal_self_attention.1} parent=1 // pred_check
      _
    $region19: #{causal_self_attention.1} parent=1 // pred_check_branch
      %42 = sbr.rel (0) target = $region21
    $region20: #{causal_self_attention.1} parent=1 // pred_region
      _
    $region21: #{causal_self_attention.1} parent=1 // pred_fallthru
      _
    // Predicated region
    $region22: #{causal_self_attention.1} parent=1 // pred_check
      _
    $region23: #{causal_self_attention.1} parent=1 // pred_check_branch
      %44 = sbr.rel (0) target = $region25
    $region24: #{causal_self_attention.1} parent=1 // pred_region
      %45 = dma.done [#allocation4], 512
    $region25: #{causal_self_attention.1} parent=1 // pred_fallthru
      _
    // Predicated region
    $region26: #{causal_self_attention.1} parent=1 // pred_check
      _
    $region27: #{causal_self_attention.1} parent=1 // pred_check_branch
      %47 = sbr.rel (0) target = $region29
    $region28: #{causal_self_attention.1} parent=1 // pred_region
      %48 = dma.done [#allocation7], 512
    $region29: #{causal_self_attention.1} parent=1 // pred_fallthru
      _
    %v49 = vld [vmem:[%s0] sm:$0xff]
    %v50 = vld [vmem:[%s0 + $0x8] sm:$0xff]
    %v51 = vld [vmem:[#allocation3] sm:$0xff]
    %v52 = vld [vmem:[#allocation3 + $0x8] sm:$0xff]
    %v53 = vld [vmem:[#allocation3 + $0x10] sm:$0xff]
    %v54 = vld [vmem:[#allocation3 + $0x18] sm:$0xff]
    %v55 = vld [vmem:[%s2] sm:$0x1]
    %v57 = vlaneseq
    %v58 = vshrl.u32 %v57, 7
    %v59 = vsub.s32 0, %v58
    %v60 = vrot.slane %v55, %v59
    %vm62 = vcmask 261120
    %v64 = vsel %vm62, %v49, 0
    %v67 = vsel %vm62, %v50, 0
    %69 = vmatprep.subr.mxu0 0.0
    %70 = vmatpush1.msra.mxu0 %v51
    %71 = vmatprep.subr.mxu0 0.0
    %72 = vmatpush1.msra.mxu0 %v52
    %73 = vmatprep.subr.mxu0 0.0
    %74 = vmatpush1.msra.mxu0 %v53
    %75 = vmatprep.subr.mxu0 0.0
    %76 = vmatpush1.msra.mxu0 %v54
    %77 = vmatprep.subr.mxu0 0.0
    %78 = vmatpush1.msra.mxu0 0.0
    %79 = vmatprep.subr.mxu0 0.0
    %80 = vmatpush1.msra.mxu0 0.0
    %81 = vmatprep.subr.mxu0 0.0
    %82 = vmatpush1.msra.mxu0 0.0
    %83 = vmatprep.subr.mxu0 0.0
    %84 = vmatpush1.msra.mxu0 0.0
    %85 = vmatprep.subr.mxu0 0.0
    %86 = vmatpush1.msra.mxu0 0.0
    %87 = vmatprep.subr.mxu0 0.0
    %88 = vmatpush1.msra.mxu0 0.0
    %89 = vmatprep.subr.mxu0 0.0
    %90 = vmatpush1.msra.mxu0 0.0
    %91 = vmatprep.subr.mxu0 0.0
    %92 = vmatpush1.msra.mxu0 0.0
    %93 = vmatprep.subr.mxu0 0.0
    %94 = vmatpush1.msra.mxu0 0.0
    %95 = vmatprep.subr.mxu0 0.0
    %96 = vmatpush1.msra.mxu0 0.0
    %97 = vmatprep.subr.mxu0 0.0
    %98 = vmatpush1.msra.mxu0 0.0
    %99 = vmatprep.subr.mxu0 0.0
    %100 = vmatpush1.msra.mxu0 0.0
    %101 = vmatprep.subr.mxu0 0.0
    %102 = vmatpush1.msra.mxu0 0.0
    %103 = vmatprep.subr.mxu0 0.0
    %104 = vmatpush1.msra.mxu0 0.0
    %105 = vmatprep.subr.mxu0 0.0
    %106 = vmatpush1.msra.mxu0 0.0
    %107 = vmatprep.subr.mxu0 0.0
    %108 = vmatpush1.msra.mxu0 0.0
    %109 = vmatprep.subr.mxu0 0.0
    %110 = vmatpush1.msra.mxu0 0.0
    %111 = vmatprep.subr.mxu0 0.0
    %112 = vmatpush1.msra.mxu0 0.0
    %113 = vmatprep.subr.mxu0 0.0
    %114 = vmatpush1.msra.mxu0 0.0
    %115 = vmatprep.subr.mxu0 0.0
    %116 = vmatpush1.msra.mxu0 0.0
    %117 = vmatprep.subr.mxu0 0.0
    %118 = vmatpush1.msra.mxu0 0.0
    %119 = vmatprep.subr.mxu0 0.0
    %120 = vmatpush1.msra.mxu0 0.0
    %121 = vmatprep.subr.mxu0 0.0
    %122 = vmatpush1.msra.mxu0 0.0
    %123 = vmatprep.subr.mxu0 0.0
    %124 = vmatpush1.msra.mxu0 0.0
    %125 = vmatprep.subr.mxu0 0.0
    %126 = vmatpush1.msra.mxu0 0.0
    %127 = vmatprep.subr.mxu0 0.0
    %128 = vmatpush1.msra.mxu0 0.0
    %129 = vmatprep.subr.mxu0 0.0
    %130 = vmatpush1.msra.mxu0 0.0
    %131 = vmatprep.subr.mxu0 0.0
    %132 = vmatpush1.msra.mxu0 0.0
    %133 = vmatprep.mubr.f32.mxu0 0.0
    %134 = vmatmul.mubr.f32.gmra.mrb[0].mxu0 %v64
    %v135 = vpop.f32.mrb[0].mxu0
    %v136 = vadd.f32 %v60, %v135
    %v137 = vpop.f32.mrb[0].mxu0
    %138 = vmatprep.mubr.f32.mxu0 0.0
    %139 = vmatmul.mubr.f32.gmra.mrb[0].mxu0 %v67
    %v140 = vpop.f32.mrb[0].mxu0
    %v141 = vadd.f32 %v60, %v140
    %v142 = vpop.f32.mrb[0].mxu0
    %143 = vdwg.mxu0
    %v144 = vmul.f32 %v136, 0.35355338
    %v145 = vmul.f32 %v141, 0.35355338
    %147 = vrot.lane.b32.xlu0 %v136, 96
    %v148 = vpop.permute.xlu0 %147
    %vm149 = vcmask 64512
    %v151 = vsel %vm149, %v144, 0
    %v153 = vsel %vm149, %v148, 0
    %155 = vmatprep.subr.mxu0 0.0
    %156 = vmatpush1.xpose.msra.mxu0 %v153
    %157 = vmatprep.subr.mxu0 0.0
    %158 = vmatpush1.xpose.msra.mxu0 0.0
    %159 = vmatprep.subr.mxu0 0.0
    %160 = vmatpush1.xpose.msra.mxu0 0.0
    %161 = vmatprep.subr.mxu0 0.0
    %162 = vmatpush1.xpose.msra.mxu0 0.0
    %163 = vmatprep.subr.mxu0 0.0
    %164 = vmatpush1.xpose.msra.mxu0 0.0
    %165 = vmatprep.subr.mxu0 0.0
    %166 = vmatpush1.xpose.msra.mxu0 0.0
    %167 = vmatprep.subr.mxu0 0.0
    %168 = vmatpush1.xpose.msra.mxu0 0.0
    %169 = vmatprep.subr.mxu0 0.0
    %170 = vmatpush1.xpose.msra.mxu0 0.0
    %171 = vmatprep.subr.mxu0 0.0
    %172 = vmatpush1.xpose.msra.mxu0 0.0
    %173 = vmatprep.subr.mxu0 0.0
    %174 = vmatpush1.xpose.msra.mxu0 0.0
    %175 = vmatprep.subr.mxu0 0.0
    %176 = vmatpush1.xpose.msra.mxu0 0.0
    %177 = vmatprep.subr.mxu0 0.0
    %178 = vmatpush1.xpose.msra.mxu0 0.0
    %179 = vmatprep.subr.mxu0 0.0
    %180 = vmatpush1.xpose.msra.mxu0 0.0
    %181 = vmatprep.subr.mxu0 0.0
    %182 = vmatpush1.xpose.msra.mxu0 0.0
    %183 = vmatprep.subr.mxu0 0.0
    %184 = vmatpush1.xpose.msra.mxu0 0.0
    %185 = vmatprep.subr.mxu0 0.0
    %186 = vmatpush1.xpose.msra.mxu0 0.0
    %187 = vmatprep.subr.mxu0 0.0
    %188 = vmatpush1.xpose.msra.mxu0 0.0
    %189 = vmatprep.subr.mxu0 0.0
    %190 = vmatpush1.xpose.msra.mxu0 0.0
    %191 = vmatprep.subr.mxu0 0.0
    %192 = vmatpush1.xpose.msra.mxu0 0.0
    %193 = vmatprep.subr.mxu0 0.0
    %194 = vmatpush1.xpose.msra.mxu0 0.0
    %195 = vmatprep.subr.mxu0 0.0
    %196 = vmatpush1.xpose.msra.mxu0 0.0
    %197 = vmatprep.subr.mxu0 0.0
    %198 = vmatpush1.xpose.msra.mxu0 0.0
    %199 = vmatprep.subr.mxu0 0.0
    %200 = vmatpush1.xpose.msra.mxu0 0.0
    %201 = vmatprep.subr.mxu0 0.0
    %202 = vmatpush1.xpose.msra.mxu0 0.0
    %203 = vmatprep.subr.mxu0 0.0
    %204 = vmatpush1.xpose.msra.mxu0 0.0
    %205 = vmatprep.subr.mxu0 0.0
    %206 = vmatpush1.xpose.msra.mxu0 0.0
    %207 = vmatprep.subr.mxu0 0.0
    %208 = vmatpush1.xpose.msra.mxu0 0.0
    %209 = vmatprep.subr.mxu0 0.0
    %210 = vmatpush1.xpose.msra.mxu0 0.0
    %211 = vmatprep.subr.mxu0 0.0
    %212 = vmatpush1.xpose.msra.mxu0 0.0
    %213 = vmatprep.subr.mxu0 0.0
    %214 = vmatpush1.xpose.msra.mxu0 0.0
    %215 = vmatprep.subr.mxu0 0.0
    %216 = vmatpush1.xpose.msra.mxu0 0.0
    %217 = vmatprep.subr.mxu0 0.0
    %218 = vmatpush1.xpose.msra.mxu0 0.0
    %219 = vmatprep.mubr.f32.mxu0 0.0
    %220 = vmatmul.mubr.f32.gmra.mrb[0].mxu0 %v151
    %v221 = vpop.f32.mrb[0].mxu0
    %v222 = vadd.f32 0.0, %v221
    %v223 = vpop.f32.mrb[0].mxu0
    %224 = vdwg.mxu0
    %v225 = vsel %vm149, %v222, -inf
    %226 = vmax.xlane.f32.xlu0 %v225
    %v227 = vpop.xlane.xlu0 %226
    %v228 = vsub.f32 %v222, %v227
    %v229 = vmul.f32 %v228, 1.442695
    %v230 = vpow.pop %v229
    %v231 = vsel %vm149, %v230, 0.0
    %232 = vadd.xlane.f32.xlu0 %v231
    %v233 = vpop.xlane.xlu0 %232
    %234 = vrot.lane.b32.xlu0 %v136, 64
    %v235 = vpop.permute.xlu0 %234
    %v238 = vsel %vm149, %v230, 0
    %240 = vmatprep.subr.mxu0 0.0
    %241 = vmatpush1.msra.mxu0 %v235
    %242 = vmatprep.subr.mxu0 0.0
    %243 = vmatpush1.msra.mxu0 0.0
    %244 = vmatprep.subr.mxu0 0.0
    %245 = vmatpush1.msra.mxu0 0.0
    %246 = vmatprep.subr.mxu0 0.0
    %247 = vmatpush1.msra.mxu0 0.0
    %248 = vmatprep.subr.mxu0 0.0
    %249 = vmatpush1.msra.mxu0 0.0
    %250 = vmatprep.subr.mxu0 0.0
    %251 = vmatpush1.msra.mxu0 0.0
    %252 = vmatprep.subr.mxu0 0.0
    %253 = vmatpush1.msra.mxu0 0.0
    %254 = vmatprep.subr.mxu0 0.0
    %255 = vmatpush1.msra.mxu0 0.0
    %256 = vmatprep.subr.mxu0 0.0
    %257 = vmatpush1.msra.mxu0 0.0
    %258 = vmatprep.subr.mxu0 0.0
    %259 = vmatpush1.msra.mxu0 0.0
    %260 = vmatprep.subr.mxu0 0.0
    %261 = vmatpush1.msra.mxu0 0.0
    %262 = vmatprep.subr.mxu0 0.0
    %263 = vmatpush1.msra.mxu0 0.0
    %264 = vmatprep.subr.mxu0 0.0
    %265 = vmatpush1.msra.mxu0 0.0
    %266 = vmatprep.subr.mxu0 0.0
    %267 = vmatpush1.msra.mxu0 0.0
    %268 = vmatprep.subr.mxu0 0.0
    %269 = vmatpush1.msra.mxu0 0.0
    %270 = vmatprep.subr.mxu0 0.0
    %271 = vmatpush1.msra.mxu0 0.0
    %272 = vmatprep.subr.mxu0 0.0
    %273 = vmatpush1.msra.mxu0 0.0
    %274 = vmatprep.subr.mxu0 0.0
    %275 = vmatpush1.msra.mxu0 0.0
    %276 = vmatprep.subr.mxu0 0.0
    %277 = vmatpush1.msra.mxu0 0.0
    %278 = vmatprep.subr.mxu0 0.0
    %279 = vmatpush1.msra.mxu0 0.0
    %280 = vmatprep.subr.mxu0 0.0
    %281 = vmatpush1.msra.mxu0 0.0
    %282 = vmatprep.subr.mxu0 0.0
    %283 = vmatpush1.msra.mxu0 0.0
    %284 = vmatprep.subr.mxu0 0.0
    %285 = vmatpush1.msra.mxu0 0.0
    %286 = vmatprep.subr.mxu0 0.0
    %287 = vmatpush1.msra.mxu0 0.0
    %288 = vmatprep.subr.mxu0 0.0
    %289 = vmatpush1.msra.mxu0 0.0
    %290 = vmatprep.subr.mxu0 0.0
    %291 = vmatpush1.msra.mxu0 0.0
    %292 = vmatprep.subr.mxu0 0.0
    %293 = vmatpush1.msra.mxu0 0.0
    %294 = vmatprep.subr.mxu0 0.0
    %295 = vmatpush1.msra.mxu0 0.0
    %296 = vmatprep.subr.mxu0 0.0
    %297 = vmatpush1.msra.mxu0 0.0
    %298 = vmatprep.subr.mxu0 0.0
    %299 = vmatpush1.msra.mxu0 0.0
    %300 = vmatprep.subr.mxu0 0.0
    %301 = vmatpush1.msra.mxu0 0.0
    %302 = vmatprep.subr.mxu0 0.0
    %303 = vmatpush1.msra.mxu0 0.0
    %304 = vmatprep.mubr.f32.mxu0 0.0
    %305 = vmatmul.mubr.f32.gmra.mrb[0].mxu0 %v238
    %v306 = vpop.f32.mrb[0].mxu0
    %v307 = vadd.f32 0.0, %v306
    %v308 = vpop.f32.mrb[0].mxu0
    %309 = vdwg.mxu0
    %v310 = vrcp.pop %v233
    %v311 = vmul.f32 %v307, %v310
    %312 = vst.msk [vmem:[#allocation2] sm:$0xff] %vm149, %v311
    %313 = vrot.lane.b32.xlu0 %v144, 120
    %v314 = vpop.permute.xlu0 %313
    %315 = vrot.lane.b32.xlu0 %v136, 88
    %v316 = vpop.permute.xlu0 %315
    %v317 = vsel %vm149, %v314, 0
    %v319 = vsel %vm149, %v316, 0
    %321 = vmatprep.subr.mxu0 0.0
    %322 = vmatpush1.xpose.msra.mxu0 %v319
    %323 = vmatprep.subr.mxu0 0.0
    %324 = vmatpush1.xpose.msra.mxu0 0.0
    %325 = vmatprep.subr.mxu0 0.0
    %326 = vmatpush1.xpose.msra.mxu0 0.0
    %327 = vmatprep.subr.mxu0 0.0
    %328 = vmatpush1.xpose.msra.mxu0 0.0
    %329 = vmatprep.subr.mxu0 0.0
    %330 = vmatpush1.xpose.msra.mxu0 0.0
    %331 = vmatprep.subr.mxu0 0.0
    %332 = vmatpush1.xpose.msra.mxu0 0.0
    %333 = vmatprep.subr.mxu0 0.0
    %334 = vmatpush1.xpose.msra.mxu0 0.0
    %335 = vmatprep.subr.mxu0 0.0
    %336 = vmatpush1.xpose.msra.mxu0 0.0
    %337 = vmatprep.subr.mxu0 0.0
    %338 = vmatpush1.xpose.msra.mxu0 0.0
    %339 = vmatprep.subr.mxu0 0.0
    %340 = vmatpush1.xpose.msra.mxu0 0.0
    %341 = vmatprep.subr.mxu0 0.0
    %342 = vmatpush1.xpose.msra.mxu0 0.0
    %343 = vmatprep.subr.mxu0 0.0
    %344 = vmatpush1.xpose.msra.mxu0 0.0
    %345 = vmatprep.subr.mxu0 0.0
    %346 = vmatpush1.xpose.msra.mxu0 0.0
    %347 = vmatprep.subr.mxu0 0.0
    %348 = vmatpush1.xpose.msra.mxu0 0.0
    %349 = vmatprep.subr.mxu0 0.0
    %350 = vmatpush1.xpose.msra.mxu0 0.0
    %351 = vmatprep.subr.mxu0 0.0
    %352 = vmatpush1.xpose.msra.mxu0 0.0
    %353 = vmatprep.subr.mxu0 0.0
    %354 = vmatpush1.xpose.msra.mxu0 0.0
    %355 = vmatprep.subr.mxu0 0.0
    %356 = vmatpush1.xpose.msra.mxu0 0.0
    %357 = vmatprep.subr.mxu0 0.0
    %358 = vmatpush1.xpose.msra.mxu0 0.0
    %359 = vmatprep.subr.mxu0 0.0
    %360 = vmatpush1.xpose.msra.mxu0 0.0
    %361 = vmatprep.subr.mxu0 0.0
    %362 = vmatpush1.xpose.msra.mxu0 0.0
    %363 = vmatprep.subr.mxu0 0.0
    %364 = vmatpush1.xpose.msra.mxu0 0.0
    %365 = vmatprep.subr.mxu0 0.0
    %366 = vmatpush1.xpose.msra.mxu0 0.0
    %367 = vmatprep.subr.mxu0 0.0
    %368 = vmatpush1.xpose.msra.mxu0 0.0
    %369 = vmatprep.subr.mxu0 0.0
    %370 = vmatpush1.xpose.msra.mxu0 0.0
    %371 = vmatprep.subr.mxu0 0.0
    %372 = vmatpush1.xpose.msra.mxu0 0.0
    %373 = vmatprep.subr.mxu0 0.0
    %374 = vmatpush1.xpose.msra.mxu0 0.0
    %375 = vmatprep.subr.mxu0 0.0
    %376 = vmatpush1.xpose.msra.mxu0 0.0
    %377 = vmatprep.subr.mxu0 0.0
    %378 = vmatpush1.xpose.msra.mxu0 0.0
    %379 = vmatprep.subr.mxu0 0.0
    %380 = vmatpush1.xpose.msra.mxu0 0.0
    %381 = vmatprep.subr.mxu0 0.0
    %382 = vmatpush1.xpose.msra.mxu0 0.0
    %383 = vmatprep.subr.mxu0 0.0
    %384 = vmatpush1.xpose.msra.mxu0 0.0
    %385 = vmatprep.mubr.f32.mxu0 0.0
    %386 = vmatmul.mubr.f32.gmra.mrb[0].mxu0 %v317
    %v387 = vpop.f32.mrb[0].mxu0
    %v388 = vadd.f32 0.0, %v387
    %v389 = vpop.f32.mrb[0].mxu0
    %390 = vdwg.mxu0
    %v391 = vsel %vm149, %v388, -inf
    %392 = vmax.xlane.f32.xlu0 %v391
    %v393 = vpop.xlane.xlu0 %392
    %v394 = vsub.f32 %v388, %v393
    %v395 = vmul.f32 %v394, 1.442695
    %v396 = vpow.pop %v395
    %v397 = vsel %vm149, %v396, 0.0
    %398 = vadd.xlane.f32.xlu0 %v397
    %v399 = vpop.xlane.xlu0 %398
    %400 = vrot.lane.b32.xlu0 %v136, 56
    %v401 = vpop.permute.xlu0 %400
    %v404 = vsel %vm149, %v396, 0
    %406 = vmatprep.subr.mxu0 0.0
    %407 = vmatpush1.msra.mxu0 %v401
    %408 = vmatprep.subr.mxu0 0.0
    %409 = vmatpush1.msra.mxu0 0.0
    %410 = vmatprep.subr.mxu0 0.0
    %411 = vmatpush1.msra.mxu0 0.0
    %412 = vmatprep.subr.mxu0 0.0
    %413 = vmatpush1.msra.mxu0 0.0
    %414 = vmatprep.subr.mxu0 0.0
    %415 = vmatpush1.msra.mxu0 0.0
    %416 = vmatprep.subr.mxu0 0.0
    %417 = vmatpush1.msra.mxu0 0.0
    %418 = vmatprep.subr.mxu0 0.0
    %419 = vmatpush1.msra.mxu0 0.0
    %420 = vmatprep.subr.mxu0 0.0
    %421 = vmatpush1.msra.mxu0 0.0
    %422 = vmatprep.subr.mxu0 0.0
    %423 = vmatpush1.msra.mxu0 0.0
    %424 = vmatprep.subr.mxu0 0.0
    %425 = vmatpush1.msra.mxu0 0.0
    %426 = vmatprep.subr.mxu0 0.0
    %427 = vmatpush1.msra.mxu0 0.0
    %428 = vmatprep.subr.mxu0 0.0
    %429 = vmatpush1.msra.mxu0 0.0
    %430 = vmatprep.subr.mxu0 0.0
    %431 = vmatpush1.msra.mxu0 0.0
    %432 = vmatprep.subr.mxu0 0.0
    %433 = vmatpush1.msra.mxu0 0.0
    %434 = vmatprep.subr.mxu0 0.0
    %435 = vmatpush1.msra.mxu0 0.0
    %436 = vmatprep.subr.mxu0 0.0
    %437 = vmatpush1.msra.mxu0 0.0
    %438 = vmatprep.subr.mxu0 0.0
    %439 = vmatpush1.msra.mxu0 0.0
    %440 = vmatprep.subr.mxu0 0.0
    %441 = vmatpush1.msra.mxu0 0.0
    %442 = vmatprep.subr.mxu0 0.0
    %443 = vmatpush1.msra.mxu0 0.0
    %444 = vmatprep.subr.mxu0 0.0
    %445 = vmatpush1.msra.mxu0 0.0
    %446 = vmatprep.subr.mxu0 0.0
    %447 = vmatpush1.msra.mxu0 0.0
    %448 = vmatprep.subr.mxu0 0.0
    %449 = vmatpush1.msra.mxu0 0.0
    %450 = vmatprep.subr.mxu0 0.0
    %451 = vmatpush1.msra.mxu0 0.0
    %452 = vmatprep.subr.mxu0 0.0
    %453 = vmatpush1.msra.mxu0 0.0
    %454 = vmatprep.subr.mxu0 0.0
    %455 = vmatpush1.msra.mxu0 0.0
    %456 = vmatprep.subr.mxu0 0.0
    %457 = vmatpush1.msra.mxu0 0.0
    %458 = vmatprep.subr.mxu0 0.0
    %459 = vmatpush1.msra.mxu0 0.0
    %460 = vmatprep.subr.mxu0 0.0
    %461 = vmatpush1.msra.mxu0 0.0
    %462 = vmatprep.subr.mxu0 0.0
    %463 = vmatpush1.msra.mxu0 0.0
    %464 = vmatprep.subr.mxu0 0.0
    %465 = vmatpush1.msra.mxu0 0.0
    %466 = vmatprep.subr.mxu0 0.0
    %467 = vmatpush1.msra.mxu0 0.0
    %468 = vmatprep.subr.mxu0 0.0
    %469 = vmatpush1.msra.mxu0 0.0
    %470 = vmatprep.mubr.f32.mxu0 0.0
    %471 = vmatmul.mubr.f32.gmra.mrb[0].mxu0 %v404
    %v472 = vpop.f32.mrb[0].mxu0
    %v473 = vadd.f32 0.0, %v472
    %v474 = vpop.f32.mrb[0].mxu0
    %475 = vdwg.mxu0
    %v476 = vrcp.pop %v399
    %v477 = vmul.f32 %v473, %v476
    %479 = vrot.lane.b32.xlu0 %v477, 8
    %v480 = vpop.permute.xlu0 %479
    %vm482 = vcmask 130112
    %483 = vst.msk [vmem:[#allocation2] sm:$0xff] %vm482, %v480
    %484 = vrot.lane.b32.xlu0 %v144, 112
    %v485 = vpop.permute.xlu0 %484
    %486 = vrot.lane.b32.xlu0 %v136, 80
    %v487 = vpop.permute.xlu0 %486
    %v488 = vsel %vm149, %v485, 0
    %v490 = vsel %vm149, %v487, 0
    %492 = vmatprep.subr.mxu0 0.0
    %493 = vmatpush1.xpose.msra.mxu0 %v490
    %494 = vmatprep.subr.mxu0 0.0
    %495 = vmatpush1.xpose.msra.mxu0 0.0
    %496 = vmatprep.subr.mxu0 0.0
    %497 = vmatpush1.xpose.msra.mxu0 0.0
    %498 = vmatprep.subr.mxu0 0.0
    %499 = vmatpush1.xpose.msra.mxu0 0.0
    %500 = vmatprep.subr.mxu0 0.0
    %501 = vmatpush1.xpose.msra.mxu0 0.0
    %502 = vmatprep.subr.mxu0 0.0
    %503 = vmatpush1.xpose.msra.mxu0 0.0
    %504 = vmatprep.subr.mxu0 0.0
    %505 = vmatpush1.xpose.msra.mxu0 0.0
    %506 = vmatprep.subr.mxu0 0.0
    %507 = vmatpush1.xpose.msra.mxu0 0.0
    %508 = vmatprep.subr.mxu0 0.0
    %509 = vmatpush1.xpose.msra.mxu0 0.0
    %510 = vmatprep.subr.mxu0 0.0
    %511 = vmatpush1.xpose.msra.mxu0 0.0
    %512 = vmatprep.subr.mxu0 0.0
    %513 = vmatpush1.xpose.msra.mxu0 0.0
    %514 = vmatprep.subr.mxu0 0.0
    %515 = vmatpush1.xpose.msra.mxu0 0.0
    %516 = vmatprep.subr.mxu0 0.0
    %517 = vmatpush1.xpose.msra.mxu0 0.0
    %518 = vmatprep.subr.mxu0 0.0
    %519 = vmatpush1.xpose.msra.mxu0 0.0
    %520 = vmatprep.subr.mxu0 0.0
    %521 = vmatpush1.xpose.msra.mxu0 0.0
    %522 = vmatprep.subr.mxu0 0.0
    %523 = vmatpush1.xpose.msra.mxu0 0.0
    %524 = vmatprep.subr.mxu0 0.0
    %525 = vmatpush1.xpose.msra.mxu0 0.0
    %526 = vmatprep.subr.mxu0 0.0
    %527 = vmatpush1.xpose.msra.mxu0 0.0
    %528 = vmatprep.subr.mxu0 0.0
    %529 = vmatpush1.xpose.msra.mxu0 0.0
    %530 = vmatprep.subr.mxu0 0.0
    %531 = vmatpush1.xpose.msra.mxu0 0.0
    %532 = vmatprep.subr.mxu0 0.0
    %533 = vmatpush1.xpose.msra.mxu0 0.0
    %534 = vmatprep.subr.mxu0 0.0
    %535 = vmatpush1.xpose.msra.mxu0 0.0
    %536 = vmatprep.subr.mxu0 0.0
    %537 = vmatpush1.xpose.msra.mxu0 0.0
    %538 = vmatprep.subr.mxu0 0.0
    %539 = vmatpush1.xpose.msra.mxu0 0.0
    %540 = vmatprep.subr.mxu0 0.0
    %541 = vmatpush1.xpose.msra.mxu0 0.0
    %542 = vmatprep.subr.mxu0 0.0
    %543 = vmatpush1.xpose.msra.mxu0 0.0
    %544 = vmatprep.subr.mxu0 0.0
    %545 = vmatpush1.xpose.msra.mxu0 0.0
    %546 = vmatprep.subr.mxu0 0.0
    %547 = vmatpush1.xpose.msra.mxu0 0.0
    %548 = vmatprep.subr.mxu0 0.0
    %549 = vmatpush1.xpose.msra.mxu0 0.0
    %550 = vmatprep.subr.mxu0 0.0
    %551 = vmatpush1.xpose.msra.mxu0 0.0
    %552 = vmatprep.subr.mxu0 0.0
    %553 = vmatpush1.xpose.msra.mxu0 0.0
    %554 = vmatprep.subr.mxu0 0.0
    %555 = vmatpush1.xpose.msra.mxu0 0.0
    %556 = vmatprep.mubr.f32.mxu0 0.0
    %557 = vmatmul.mubr.f32.gmra.mrb[0].mxu0 %v488
    %v558 = vpop.f32.mrb[0].mxu0
    %v559 = vadd.f32 0.0, %v558
    %v560 = vpop.f32.mrb[0].mxu0
    %561 = vdwg.mxu0
    %v562 = vsel %vm149, %v559, -inf
    %563 = vmax.xlane.f32.xlu0 %v562
    %v564 = vpop.xlane.xlu0 %563
    %v565 = vsub.f32 %v559, %v564
    %v566 = vmul.f32 %v565, 1.442695
    %v567 = vpow.pop %v566
    %v568 = vsel %vm149, %v567, 0.0
    %569 = vadd.xlane.f32.xlu0 %v568
    %v570 = vpop.xlane.xlu0 %569
    %571 = vrot.lane.b32.xlu0 %v136, 48
    %v572 = vpop.permute.xlu0 %571
    %v575 = vsel %vm149, %v567, 0
    %577 = vmatprep.subr.mxu0 0.0
    %578 = vmatpush1.msra.mxu0 %v572
    %579 = vmatprep.subr.mxu0 0.0
    %580 = vmatpush1.msra.mxu0 0.0
    %581 = vmatprep.subr.mxu0 0.0
    %582 = vmatpush1.msra.mxu0 0.0
    %583 = vmatprep.subr.mxu0 0.0
    %584 = vmatpush1.msra.mxu0 0.0
    %585 = vmatprep.subr.mxu0 0.0
    %586 = vmatpush1.msra.mxu0 0.0
    %587 = vmatprep.subr.mxu0 0.0
    %588 = vmatpush1.msra.mxu0 0.0
    %589 = vmatprep.subr.mxu0 0.0
    %590 = vmatpush1.msra.mxu0 0.0
    %591 = vmatprep.subr.mxu0 0.0
    %592 = vmatpush1.msra.mxu0 0.0
    %593 = vmatprep.subr.mxu0 0.0
    %594 = vmatpush1.msra.mxu0 0.0
    %595 = vmatprep.subr.mxu0 0.0
    %596 = vmatpush1.msra.mxu0 0.0
    %597 = vmatprep.subr.mxu0 0.0
    %598 = vmatpush1.msra.mxu0 0.0
    %599 = vmatprep.subr.mxu0 0.0
    %600 = vmatpush1.msra.mxu0 0.0
    %601 = vmatprep.subr.mxu0 0.0
    %602 = vmatpush1.msra.mxu0 0.0
    %603 = vmatprep.subr.mxu0 0.0
    %604 = vmatpush1.msra.mxu0 0.0
    %605 = vmatprep.subr.mxu0 0.0
    %606 = vmatpush1.msra.mxu0 0.0
    %607 = vmatprep.subr.mxu0 0.0
    %608 = vmatpush1.msra.mxu0 0.0
    %609 = vmatprep.subr.mxu0 0.0
    %610 = vmatpush1.msra.mxu0 0.0
    %611 = vmatprep.subr.mxu0 0.0
    %612 = vmatpush1.msra.mxu0 0.0
    %613 = vmatprep.subr.mxu0 0.0
    %614 = vmatpush1.msra.mxu0 0.0
    %615 = vmatprep.subr.mxu0 0.0
    %616 = vmatpush1.msra.mxu0 0.0
    %617 = vmatprep.subr.mxu0 0.0
    %618 = vmatpush1.msra.mxu0 0.0
    %619 = vmatprep.subr.mxu0 0.0
    %620 = vmatpush1.msra.mxu0 0.0
    %621 = vmatprep.subr.mxu0 0.0
    %622 = vmatpush1.msra.mxu0 0.0
    %623 = vmatprep.subr.mxu0 0.0
    %624 = vmatpush1.msra.mxu0 0.0
    %625 = vmatprep.subr.mxu0 0.0
    %626 = vmatpush1.msra.mxu0 0.0
    %627 = vmatprep.subr.mxu0 0.0
    %628 = vmatpush1.msra.mxu0 0.0
    %629 = vmatprep.subr.mxu0 0.0
    %630 = vmatpush1.msra.mxu0 0.0
    %631 = vmatprep.subr.mxu0 0.0
    %632 = vmatpush1.msra.mxu0 0.0
    %633 = vmatprep.subr.mxu0 0.0
    %634 = vmatpush1.msra.mxu0 0.0
    %635 = vmatprep.subr.mxu0 0.0
    %636 = vmatpush1.msra.mxu0 0.0
    %637 = vmatprep.subr.mxu0 0.0
    %638 = vmatpush1.msra.mxu0 0.0
    %639 = vmatprep.subr.mxu0 0.0
    %640 = vmatpush1.msra.mxu0 0.0
    %641 = vmatprep.mubr.f32.mxu0 0.0
    %642 = vmatmul.mubr.f32.gmra.mrb[0].mxu0 %v575
    %v643 = vpop.f32.mrb[0].mxu0
    %v644 = vadd.f32 0.0, %v643
    %v645 = vpop.f32.mrb[0].mxu0
    %646 = vdwg.mxu0
    %v647 = vrcp.pop %v570
    %v648 = vmul.f32 %v644, %v647
    %650 = vrot.lane.b32.xlu0 %v648, 16
    %v651 = vpop.permute.xlu0 %650
    %vm653 = vcmask 195712
    %654 = vst.msk [vmem:[#allocation2] sm:$0xff] %vm653, %v651
    %655 = vrot.lane.b32.xlu0 %v144, 104
    %v656 = vpop.permute.xlu0 %655
    %657 = vrot.lane.b32.xlu0 %v136, 72
    %v658 = vpop.permute.xlu0 %657
    %v659 = vsel %vm149, %v656, 0
    %v661 = vsel %vm149, %v658, 0
    %663 = vmatprep.subr.mxu0 0.0
    %664 = vmatpush1.xpose.msra.mxu0 %v661
    %665 = vmatprep.subr.mxu0 0.0
    %666 = vmatpush1.xpose.msra.mxu0 0.0
    %667 = vmatprep.subr.mxu0 0.0
    %668 = vmatpush1.xpose.msra.mxu0 0.0
    %669 = vmatprep.subr.mxu0 0.0
    %670 = vmatpush1.xpose.msra.mxu0 0.0
    %671 = vmatprep.subr.mxu0 0.0
    %672 = vmatpush1.xpose.msra.mxu0 0.0
    %673 = vmatprep.subr.mxu0 0.0
    %674 = vmatpush1.xpose.msra.mxu0 0.0
    %675 = vmatprep.subr.mxu0 0.0
    %676 = vmatpush1.xpose.msra.mxu0 0.0
    %677 = vmatprep.subr.mxu0 0.0
    %678 = vmatpush1.xpose.msra.mxu0 0.0
    %679 = vmatprep.subr.mxu0 0.0
    %680 = vmatpush1.xpose.msra.mxu0 0.0
    %681 = vmatprep.subr.mxu0 0.0
    %682 = vmatpush1.xpose.msra.mxu0 0.0
    %683 = vmatprep.subr.mxu0 0.0
    %684 = vmatpush1.xpose.msra.mxu0 0.0
    %685 = vmatprep.subr.mxu0 0.0
    %686 = vmatpush1.xpose.msra.mxu0 0.0
    %687 = vmatprep.subr.mxu0 0.0
    %688 = vmatpush1.xpose.msra.mxu0 0.0
    %689 = vmatprep.subr.mxu0 0.0
    %690 = vmatpush1.xpose.msra.mxu0 0.0
    %691 = vmatprep.subr.mxu0 0.0
    %692 = vmatpush1.xpose.msra.mxu0 0.0
    %693 = vmatprep.subr.mxu0 0.0
    %694 = vmatpush1.xpose.msra.mxu0 0.0
    %695 = vmatprep.subr.mxu0 0.0
    %696 = vmatpush1.xpose.msra.mxu0 0.0
    %697 = vmatprep.subr.mxu0 0.0
    %698 = vmatpush1.xpose.msra.mxu0 0.0
    %699 = vmatprep.subr.mxu0 0.0
    %700 = vmatpush1.xpose.msra.mxu0 0.0
    %701 = vmatprep.subr.mxu0 0.0
    %702 = vmatpush1.xpose.msra.mxu0 0.0
    %703 = vmatprep.subr.mxu0 0.0
    %704 = vmatpush1.xpose.msra.mxu0 0.0
    %705 = vmatprep.subr.mxu0 0.0
    %706 = vmatpush1.xpose.msra.mxu0 0.0
    %707 = vmatprep.subr.mxu0 0.0
    %708 = vmatpush1.xpose.msra.mxu0 0.0
    %709 = vmatprep.subr.mxu0 0.0
    %710 = vmatpush1.xpose.msra.mxu0 0.0
    %711 = vmatprep.subr.mxu0 0.0
    %712 = vmatpush1.xpose.msra.mxu0 0.0
    %713 = vmatprep.subr.mxu0 0.0
    %714 = vmatpush1.xpose.msra.mxu0 0.0
    %715 = vmatprep.subr.mxu0 0.0
    %716 = vmatpush1.xpose.msra.mxu0 0.0
    %717 = vmatprep.subr.mxu0 0.0
    %718 = vmatpush1.xpose.msra.mxu0 0.0
    %719 = vmatprep.subr.mxu0 0.0
    %720 = vmatpush1.xpose.msra.mxu0 0.0
    %721 = vmatprep.subr.mxu0 0.0
    %722 = vmatpush1.xpose.msra.mxu0 0.0
    %723 = vmatprep.subr.mxu0 0.0
    %724 = vmatpush1.xpose.msra.mxu0 0.0
    %725 = vmatprep.subr.mxu0 0.0
    %726 = vmatpush1.xpose.msra.mxu0 0.0
    %727 = vmatprep.mubr.f32.mxu0 0.0
    %728 = vmatmul.mubr.f32.gmra.mrb[0].mxu0 %v659
    %v729 = vpop.f32.mrb[0].mxu0
    %v730 = vadd.f32 0.0, %v729
    %v731 = vpop.f32.mrb[0].mxu0
    %732 = vdwg.mxu0
    %v733 = vsel %vm149, %v730, -inf
    %734 = vmax.xlane.f32.xlu0 %v733
    %v735 = vpop.xlane.xlu0 %734
    %v736 = vsub.f32 %v730, %v735
    %v737 = vmul.f32 %v736, 1.442695
    %v738 = vpow.pop %v737
    %v739 = vsel %vm149, %v738, 0.0
    %740 = vadd.xlane.f32.xlu0 %v739
    %v741 = vpop.xlane.xlu0 %740
    %742 = vrot.lane.b32.xlu0 %v136, 40
    %v743 = vpop.permute.xlu0 %742
    %v746 = vsel %vm149, %v738, 0
    %748 = vmatprep.subr.mxu0 0.0
    %749 = vmatpush1.msra.mxu0 %v743
    %750 = vmatprep.subr.mxu0 0.0
    %751 = vmatpush1.msra.mxu0 0.0
    %752 = vmatprep.subr.mxu0 0.0
    %753 = vmatpush1.msra.mxu0 0.0
    %754 = vmatprep.subr.mxu0 0.0
    %755 = vmatpush1.msra.mxu0 0.0
    %756 = vmatprep.subr.mxu0 0.0
    %757 = vmatpush1.msra.mxu0 0.0
    %758 = vmatprep.subr.mxu0 0.0
    %759 = vmatpush1.msra.mxu0 0.0
    %760 = vmatprep.subr.mxu0 0.0
    %761 = vmatpush1.msra.mxu0 0.0
    %762 = vmatprep.subr.mxu0 0.0
    %763 = vmatpush1.msra.mxu0 0.0
    %764 = vmatprep.subr.mxu0 0.0
    %765 = vmatpush1.msra.mxu0 0.0
    %766 = vmatprep.subr.mxu0 0.0
    %767 = vmatpush1.msra.mxu0 0.0
    %768 = vmatprep.subr.mxu0 0.0
    %769 = vmatpush1.msra.mxu0 0.0
    %770 = vmatprep.subr.mxu0 0.0
    %771 = vmatpush1.msra.mxu0 0.0
    %772 = vmatprep.subr.mxu0 0.0
    %773 = vmatpush1.msra.mxu0 0.0
    %774 = vmatprep.subr.mxu0 0.0
    %775 = vmatpush1.msra.mxu0 0.0
    %776 = vmatprep.subr.mxu0 0.0
    %777 = vmatpush1.msra.mxu0 0.0
    %778 = vmatprep.subr.mxu0 0.0
    %779 = vmatpush1.msra.mxu0 0.0
    %780 = vmatprep.subr.mxu0 0.0
    %781 = vmatpush1.msra.mxu0 0.0
    %782 = vmatprep.subr.mxu0 0.0
    %783 = vmatpush1.msra.mxu0 0.0
    %784 = vmatprep.subr.mxu0 0.0
    %785 = vmatpush1.msra.mxu0 0.0
    %786 = vmatprep.subr.mxu0 0.0
    %787 = vmatpush1.msra.mxu0 0.0
    %788 = vmatprep.subr.mxu0 0.0
    %789 = vmatpush1.msra.mxu0 0.0
    %790 = vmatprep.subr.mxu0 0.0
    %791 = vmatpush1.msra.mxu0 0.0
    %792 = vmatprep.subr.mxu0 0.0
    %793 = vmatpush1.msra.mxu0 0.0
    %794 = vmatprep.subr.mxu0 0.0
    %795 = vmatpush1.msra.mxu0 0.0
    %796 = vmatprep.subr.mxu0 0.0
    %797 = vmatpush1.msra.mxu0 0.0
    %798 = vmatprep.subr.mxu0 0.0
    %799 = vmatpush1.msra.mxu0 0.0
    %800 = vmatprep.subr.mxu0 0.0
    %801 = vmatpush1.msra.mxu0 0.0
    %802 = vmatprep.subr.mxu0 0.0
    %803 = vmatpush1.msra.mxu0 0.0
    %804 = vmatprep.subr.mxu0 0.0
    %805 = vmatpush1.msra.mxu0 0.0
    %806 = vmatprep.subr.mxu0 0.0
    %807 = vmatpush1.msra.mxu0 0.0
    %808 = vmatprep.subr.mxu0 0.0
    %809 = vmatpush1.msra.mxu0 0.0
    %810 = vmatprep.subr.mxu0 0.0
    %811 = vmatpush1.msra.mxu0 0.0
    %812 = vmatprep.mubr.f32.mxu0 0.0
    %813 = vmatmul.mubr.f32.gmra.mrb[0].mxu0 %v746
    %v814 = vpop.f32.mrb[0].mxu0
    %v815 = vadd.f32 0.0, %v814
    %v816 = vpop.f32.mrb[0].mxu0
    %817 = vdwg.mxu0
    %v818 = vrcp.pop %v741
    %v819 = vmul.f32 %v815, %v818
    %821 = vrot.lane.b32.xlu0 %v819, 24
    %v822 = vpop.permute.xlu0 %821
    %vm824 = vcmask 261312
    %825 = vst.msk [vmem:[#allocation2] sm:$0xff] %vm824, %v822
    %827 = vrot.lane.b32.xlu0 %v141, 96
    %v828 = vpop.permute.xlu0 %827
    %v830 = vsel %vm149, %v145, 0
    %v832 = vsel %vm149, %v828, 0
    %834 = vmatprep.subr.mxu0 0.0
    %835 = vmatpush1.xpose.msra.mxu0 %v832
    %836 = vmatprep.subr.mxu0 0.0
    %837 = vmatpush1.xpose.msra.mxu0 0.0
    %838 = vmatprep.subr.mxu0 0.0
    %839 = vmatpush1.xpose.msra.mxu0 0.0
    %840 = vmatprep.subr.mxu0 0.0
    %841 = vmatpush1.xpose.msra.mxu0 0.0
    %842 = vmatprep.subr.mxu0 0.0
    %843 = vmatpush1.xpose.msra.mxu0 0.0
    %844 = vmatprep.subr.mxu0 0.0
    %845 = vmatpush1.xpose.msra.mxu0 0.0
    %846 = vmatprep.subr.mxu0 0.0
    %847 = vmatpush1.xpose.msra.mxu0 0.0
    %848 = vmatprep.subr.mxu0 0.0
    %849 = vmatpush1.xpose.msra.mxu0 0.0
    %850 = vmatprep.subr.mxu0 0.0
    %851 = vmatpush1.xpose.msra.mxu0 0.0
    %852 = vmatprep.subr.mxu0 0.0
    %853 = vmatpush1.xpose.msra.mxu0 0.0
    %854 = vmatprep.subr.mxu0 0.0
    %855 = vmatpush1.xpose.msra.mxu0 0.0
    %856 = vmatprep.subr.mxu0 0.0
    %857 = vmatpush1.xpose.msra.mxu0 0.0
    %858 = vmatprep.subr.mxu0 0.0
    %859 = vmatpush1.xpose.msra.mxu0 0.0
    %860 = vmatprep.subr.mxu0 0.0
    %861 = vmatpush1.xpose.msra.mxu0 0.0
    %862 = vmatprep.subr.mxu0 0.0
    %863 = vmatpush1.xpose.msra.mxu0 0.0
    %864 = vmatprep.subr.mxu0 0.0
    %865 = vmatpush1.xpose.msra.mxu0 0.0
    %866 = vmatprep.subr.mxu0 0.0
    %867 = vmatpush1.xpose.msra.mxu0 0.0
    %868 = vmatprep.subr.mxu0 0.0
    %869 = vmatpush1.xpose.msra.mxu0 0.0
    %870 = vmatprep.subr.mxu0 0.0
    %871 = vmatpush1.xpose.msra.mxu0 0.0
    %872 = vmatprep.subr.mxu0 0.0
    %873 = vmatpush1.xpose.msra.mxu0 0.0
    %874 = vmatprep.subr.mxu0 0.0
    %875 = vmatpush1.xpose.msra.mxu0 0.0
    %876 = vmatprep.subr.mxu0 0.0
    %877 = vmatpush1.xpose.msra.mxu0 0.0
    %878 = vmatprep.subr.mxu0 0.0
    %879 = vmatpush1.xpose.msra.mxu0 0.0
    %880 = vmatprep.subr.mxu0 0.0
    %881 = vmatpush1.xpose.msra.mxu0 0.0
    %882 = vmatprep.subr.mxu0 0.0
    %883 = vmatpush1.xpose.msra.mxu0 0.0
    %884 = vmatprep.subr.mxu0 0.0
    %885 = vmatpush1.xpose.msra.mxu0 0.0
    %886 = vmatprep.subr.mxu0 0.0
    %887 = vmatpush1.xpose.msra.mxu0 0.0
    %888 = vmatprep.subr.mxu0 0.0
    %889 = vmatpush1.xpose.msra.mxu0 0.0
    %890 = vmatprep.subr.mxu0 0.0
    %891 = vmatpush1.xpose.msra.mxu0 0.0
    %892 = vmatprep.subr.mxu0 0.0
    %893 = vmatpush1.xpose.msra.mxu0 0.0
    %894 = vmatprep.subr.mxu0 0.0
    %895 = vmatpush1.xpose.msra.mxu0 0.0
    %896 = vmatprep.subr.mxu0 0.0
    %897 = vmatpush1.xpose.msra.mxu0 0.0
    %898 = vmatprep.mubr.f32.mxu0 0.0
    %899 = vmatmul.mubr.f32.gmra.mrb[0].mxu0 %v830
    %v900 = vpop.f32.mrb[0].mxu0
    %v901 = vadd.f32 0.0, %v900
    %v902 = vpop.f32.mrb[0].mxu0
    %903 = vdwg.mxu0
    %v904 = vsel %vm149, %v901, -inf
    %905 = vmax.xlane.f32.xlu0 %v904
    %v906 = vpop.xlane.xlu0 %905
    %v907 = vsub.f32 %v901, %v906
    %v908 = vmul.f32 %v907, 1.442695
    %v909 = vpow.pop %v908
    %v910 = vsel %vm149, %v909, 0.0
    %911 = vadd.xlane.f32.xlu0 %v910
    %v912 = vpop.xlane.xlu0 %911
    %913 = vrot.lane.b32.xlu0 %v141, 64
    %v914 = vpop.permute.xlu0 %913
    %v917 = vsel %vm149, %v909, 0
    %919 = vmatprep.subr.mxu0 0.0
    %920 = vmatpush1.msra.mxu0 %v914
    %921 = vmatprep.subr.mxu0 0.0
    %922 = vmatpush1.msra.mxu0 0.0
    %923 = vmatprep.subr.mxu0 0.0
    %924 = vmatpush1.msra.mxu0 0.0
    %925 = vmatprep.subr.mxu0 0.0
    %926 = vmatpush1.msra.mxu0 0.0
    %927 = vmatprep.subr.mxu0 0.0
    %928 = vmatpush1.msra.mxu0 0.0
    %929 = vmatprep.subr.mxu0 0.0
    %930 = vmatpush1.msra.mxu0 0.0
    %931 = vmatprep.subr.mxu0 0.0
    %932 = vmatpush1.msra.mxu0 0.0
    %933 = vmatprep.subr.mxu0 0.0
    %934 = vmatpush1.msra.mxu0 0.0
    %935 = vmatprep.subr.mxu0 0.0
    %936 = vmatpush1.msra.mxu0 0.0
    %937 = vmatprep.subr.mxu0 0.0
    %938 = vmatpush1.msra.mxu0 0.0
    %939 = vmatprep.subr.mxu0 0.0
    %940 = vmatpush1.msra.mxu0 0.0
    %941 = vmatprep.subr.mxu0 0.0
    %942 = vmatpush1.msra.mxu0 0.0
    %943 = vmatprep.subr.mxu0 0.0
    %944 = vmatpush1.msra.mxu0 0.0
    %945 = vmatprep.subr.mxu0 0.0
    %946 = vmatpush1.msra.mxu0 0.0
    %947 = vmatprep.subr.mxu0 0.0
    %948 = vmatpush1.msra.mxu0 0.0
    %949 = vmatprep.subr.mxu0 0.0
    %950 = vmatpush1.msra.mxu0 0.0
    %951 = vmatprep.subr.mxu0 0.0
    %952 = vmatpush1.msra.mxu0 0.0
    %953 = vmatprep.subr.mxu0 0.0
    %954 = vmatpush1.msra.mxu0 0.0
    %955 = vmatprep.subr.mxu0 0.0
    %956 = vmatpush1.msra.mxu0 0.0
    %957 = vmatprep.subr.mxu0 0.0
    %958 = vmatpush1.msra.mxu0 0.0
    %959 = vmatprep.subr.mxu0 0.0
    %960 = vmatpush1.msra.mxu0 0.0
    %961 = vmatprep.subr.mxu0 0.0
    %962 = vmatpush1.msra.mxu0 0.0
    %963 = vmatprep.subr.mxu0 0.0
    %964 = vmatpush1.msra.mxu0 0.0
    %965 = vmatprep.subr.mxu0 0.0
    %966 = vmatpush1.msra.mxu0 0.0
    %967 = vmatprep.subr.mxu0 0.0
    %968 = vmatpush1.msra.mxu0 0.0
    %969 = vmatprep.subr.mxu0 0.0
    %970 = vmatpush1.msra.mxu0 0.0
    %971 = vmatprep.subr.mxu0 0.0
    %972 = vmatpush1.msra.mxu0 0.0
    %973 = vmatprep.subr.mxu0 0.0
    %974 = vmatpush1.msra.mxu0 0.0
    %975 = vmatprep.subr.mxu0 0.0
    %976 = vmatpush1.msra.mxu0 0.0
    %977 = vmatprep.subr.mxu0 0.0
    %978 = vmatpush1.msra.mxu0 0.0
    %979 = vmatprep.subr.mxu0 0.0
    %980 = vmatpush1.msra.mxu0 0.0
    %981 = vmatprep.subr.mxu0 0.0
    %982 = vmatpush1.msra.mxu0 0.0
    %983 = vmatprep.mubr.f32.mxu0 0.0
    %984 = vmatmul.mubr.f32.gmra.mrb[0].mxu0 %v917
    %v985 = vpop.f32.mrb[0].mxu0
    %v986 = vadd.f32 0.0, %v985
    %v987 = vpop.f32.mrb[0].mxu0
    %988 = vdwg.mxu0
    %v989 = vrcp.pop %v912
    %v990 = vmul.f32 %v986, %v989
    %991 = vst.msk [vmem:[#allocation2 + $0x8] sm:$0xff] %vm149, %v990
    %992 = vrot.lane.b32.xlu0 %v145, 120
    %v993 = vpop.permute.xlu0 %992
    %994 = vrot.lane.b32.xlu0 %v141, 88
    %v995 = vpop.permute.xlu0 %994
    %v996 = vsel %vm149, %v993, 0
    %v998 = vsel %vm149, %v995, 0
    %1000 = vmatprep.subr.mxu0 0.0
    %1001 = vmatpush1.xpose.msra.mxu0 %v998
    %1002 = vmatprep.subr.mxu0 0.0
    %1003 = vmatpush1.xpose.msra.mxu0 0.0
    %1004 = vmatprep.subr.mxu0 0.0
    %1005 = vmatpush1.xpose.msra.mxu0 0.0
    %1006 = vmatprep.subr.mxu0 0.0
    %1007 = vmatpush1.xpose.msra.mxu0 0.0
    %1008 = vmatprep.subr.mxu0 0.0
    %1009 = vmatpush1.xpose.msra.mxu0 0.0
    %1010 = vmatprep.subr.mxu0 0.0
    %1011 = vmatpush1.xpose.msra.mxu0 0.0
    %1012 = vmatprep.subr.mxu0 0.0
    %1013 = vmatpush1.xpose.msra.mxu0 0.0
    %1014 = vmatprep.subr.mxu0 0.0
    %1015 = vmatpush1.xpose.msra.mxu0 0.0
    %1016 = vmatprep.subr.mxu0 0.0
    %1017 = vmatpush1.xpose.msra.mxu0 0.0
    %1018 = vmatprep.subr.mxu0 0.0
    %1019 = vmatpush1.xpose.msra.mxu0 0.0
    %1020 = vmatprep.subr.mxu0 0.0
    %1021 = vmatpush1.xpose.msra.mxu0 0.0
    %1022 = vmatprep.subr.mxu0 0.0
    %1023 = vmatpush1.xpose.msra.mxu0 0.0
    %1024 = vmatprep.subr.mxu0 0.0
    %1025 = vmatpush1.xpose.msra.mxu0 0.0
    %1026 = vmatprep.subr.mxu0 0.0
    %1027 = vmatpush1.xpose.msra.mxu0 0.0
    %1028 = vmatprep.subr.mxu0 0.0
    %1029 = vmatpush1.xpose.msra.mxu0 0.0
    %1030 = vmatprep.subr.mxu0 0.0
    %1031 = vmatpush1.xpose.msra.mxu0 0.0
    %1032 = vmatprep.subr.mxu0 0.0
    %1033 = vmatpush1.xpose.msra.mxu0 0.0
    %1034 = vmatprep.subr.mxu0 0.0
    %1035 = vmatpush1.xpose.msra.mxu0 0.0
    %1036 = vmatprep.subr.mxu0 0.0
    %1037 = vmatpush1.xpose.msra.mxu0 0.0
    %1038 = vmatprep.subr.mxu0 0.0
    %1039 = vmatpush1.xpose.msra.mxu0 0.0
    %1040 = vmatprep.subr.mxu0 0.0
    %1041 = vmatpush1.xpose.msra.mxu0 0.0
    %1042 = vmatprep.subr.mxu0 0.0
    %1043 = vmatpush1.xpose.msra.mxu0 0.0
    %1044 = vmatprep.subr.mxu0 0.0
    %1045 = vmatpush1.xpose.msra.mxu0 0.0
    %1046 = vmatprep.subr.mxu0 0.0
    %1047 = vmatpush1.xpose.msra.mxu0 0.0
    %1048 = vmatprep.subr.mxu0 0.0
    %1049 = vmatpush1.xpose.msra.mxu0 0.0
    %1050 = vmatprep.subr.mxu0 0.0
    %1051 = vmatpush1.xpose.msra.mxu0 0.0
    %1052 = vmatprep.subr.mxu0 0.0
    %1053 = vmatpush1.xpose.msra.mxu0 0.0
    %1054 = vmatprep.subr.mxu0 0.0
    %1055 = vmatpush1.xpose.msra.mxu0 0.0
    %1056 = vmatprep.subr.mxu0 0.0
    %1057 = vmatpush1.xpose.msra.mxu0 0.0
    %1058 = vmatprep.subr.mxu0 0.0
    %1059 = vmatpush1.xpose.msra.mxu0 0.0
    %1060 = vmatprep.subr.mxu0 0.0
    %1061 = vmatpush1.xpose.msra.mxu0 0.0
    %1062 = vmatprep.subr.mxu0 0.0
    %1063 = vmatpush1.xpose.msra.mxu0 0.0
    %1064 = vmatprep.mubr.f32.mxu0 0.0
    %1065 = vmatmul.mubr.f32.gmra.mrb[0].mxu0 %v996
    %v1066 = vpop.f32.mrb[0].mxu0
    %v1067 = vadd.f32 0.0, %v1066
    %v1068 = vpop.f32.mrb[0].mxu0
    %1069 = vdwg.mxu0
    %v1070 = vsel %vm149, %v1067, -inf
    %1071 = vmax.xlane.f32.xlu0 %v1070
    %v1072 = vpop.xlane.xlu0 %1071
    %v1073 = vsub.f32 %v1067, %v1072
    %v1074 = vmul.f32 %v1073, 1.442695
    %v1075 = vpow.pop %v1074
    %v1076 = vsel %vm149, %v1075, 0.0
    %1077 = vadd.xlane.f32.xlu0 %v1076
    %v1078 = vpop.xlane.xlu0 %1077
    %1079 = vrot.lane.b32.xlu0 %v141, 56
    %v1080 = vpop.permute.xlu0 %1079
    %v1083 = vsel %vm149, %v1075, 0
    %1085 = vmatprep.subr.mxu0 0.0
    %1086 = vmatpush1.msra.mxu0 %v1080
    %1087 = vmatprep.subr.mxu0 0.0
    %1088 = vmatpush1.msra.mxu0 0.0
    %1089 = vmatprep.subr.mxu0 0.0
    %1090 = vmatpush1.msra.mxu0 0.0
    %1091 = vmatprep.subr.mxu0 0.0
    %1092 = vmatpush1.msra.mxu0 0.0
    %1093 = vmatprep.subr.mxu0 0.0
    %1094 = vmatpush1.msra.mxu0 0.0
    %1095 = vmatprep.subr.mxu0 0.0
    %1096 = vmatpush1.msra.mxu0 0.0
    %1097 = vmatprep.subr.mxu0 0.0
    %1098 = vmatpush1.msra.mxu0 0.0
    %1099 = vmatprep.subr.mxu0 0.0
    %1100 = vmatpush1.msra.mxu0 0.0
    %1101 = vmatprep.subr.mxu0 0.0
    %1102 = vmatpush1.msra.mxu0 0.0
    %1103 = vmatprep.subr.mxu0 0.0
    %1104 = vmatpush1.msra.mxu0 0.0
    %1105 = vmatprep.subr.mxu0 0.0
    %1106 = vmatpush1.msra.mxu0 0.0
    %1107 = vmatprep.subr.mxu0 0.0
    %1108 = vmatpush1.msra.mxu0 0.0
    %1109 = vmatprep.subr.mxu0 0.0
    %1110 = vmatpush1.msra.mxu0 0.0
    %1111 = vmatprep.subr.mxu0 0.0
    %1112 = vmatpush1.msra.mxu0 0.0
    %1113 = vmatprep.subr.mxu0 0.0
    %1114 = vmatpush1.msra.mxu0 0.0
    %1115 = vmatprep.subr.mxu0 0.0
    %1116 = vmatpush1.msra.mxu0 0.0
    %1117 = vmatprep.subr.mxu0 0.0
    %1118 = vmatpush1.msra.mxu0 0.0
    %1119 = vmatprep.subr.mxu0 0.0
    %1120 = vmatpush1.msra.mxu0 0.0
    %1121 = vmatprep.subr.mxu0 0.0
    %1122 = vmatpush1.msra.mxu0 0.0
    %1123 = vmatprep.subr.mxu0 0.0
    %1124 = vmatpush1.msra.mxu0 0.0
    %1125 = vmatprep.subr.mxu0 0.0
    %1126 = vmatpush1.msra.mxu0 0.0
    %1127 = vmatprep.subr.mxu0 0.0
    %1128 = vmatpush1.msra.mxu0 0.0
    %1129 = vmatprep.subr.mxu0 0.0
    %1130 = vmatpush1.msra.mxu0 0.0
    %1131 = vmatprep.subr.mxu0 0.0
    %1132 = vmatpush1.msra.mxu0 0.0
    %1133 = vmatprep.subr.mxu0 0.0
    %1134 = vmatpush1.msra.mxu0 0.0
    %1135 = vmatprep.subr.mxu0 0.0
    %1136 = vmatpush1.msra.mxu0 0.0
    %1137 = vmatprep.subr.mxu0 0.0
    %1138 = vmatpush1.msra.mxu0 0.0
    %1139 = vmatprep.subr.mxu0 0.0
    %1140 = vmatpush1.msra.mxu0 0.0
    %1141 = vmatprep.subr.mxu0 0.0
    %1142 = vmatpush1.msra.mxu0 0.0
    %1143 = vmatprep.subr.mxu0 0.0
    %1144 = vmatpush1.msra.mxu0 0.0
    %1145 = vmatprep.subr.mxu0 0.0
    %1146 = vmatpush1.msra.mxu0 0.0
    %1147 = vmatprep.subr.mxu0 0.0
    %1148 = vmatpush1.msra.mxu0 0.0
    %1149 = vmatprep.mubr.f32.mxu0 0.0
    %1150 = vmatmul.mubr.f32.gmra.mrb[0].mxu0 %v1083
    %v1151 = vpop.f32.mrb[0].mxu0
    %v1152 = vadd.f32 0.0, %v1151
    %v1153 = vpop.f32.mrb[0].mxu0
    %1154 = vdwg.mxu0
    %v1155 = vrcp.pop %v1078
    %v1156 = vmul.f32 %v1152, %v1155
    %1158 = vrot.lane.b32.xlu0 %v1156, 8
    %v1159 = vpop.permute.xlu0 %1158
    %1161 = vst.msk [vmem:[#allocation2 + $0x8] sm:$0xff] %vm482, %v1159
    %1162 = vrot.lane.b32.xlu0 %v145, 112
    %v1163 = vpop.permute.xlu0 %1162
    %1164 = vrot.lane.b32.xlu0 %v141, 80
    %v1165 = vpop.permute.xlu0 %1164
    %v1166 = vsel %vm149, %v1163, 0
    %v1168 = vsel %vm149, %v1165, 0
    %1170 = vmatprep.subr.mxu0 0.0
    %1171 = vmatpush1.xpose.msra.mxu0 %v1168
    %1172 = vmatprep.subr.mxu0 0.0
    %1173 = vmatpush1.xpose.msra.mxu0 0.0
    %1174 = vmatprep.subr.mxu0 0.0
    %1175 = vmatpush1.xpose.msra.mxu0 0.0
    %1176 = vmatprep.subr.mxu0 0.0
    %1177 = vmatpush1.xpose.msra.mxu0 0.0
    %1178 = vmatprep.subr.mxu0 0.0
    %1179 = vmatpush1.xpose.msra.mxu0 0.0
    %1180 = vmatprep.subr.mxu0 0.0
    %1181 = vmatpush1.xpose.msra.mxu0 0.0
    %1182 = vmatprep.subr.mxu0 0.0
    %1183 = vmatpush1.xpose.msra.mxu0 0.0
    %1184 = vmatprep.subr.mxu0 0.0
    %1185 = vmatpush1.xpose.msra.mxu0 0.0
    %1186 = vmatprep.subr.mxu0 0.0
    %1187 = vmatpush1.xpose.msra.mxu0 0.0
    %1188 = vmatprep.subr.mxu0 0.0
    %1189 = vmatpush1.xpose.msra.mxu0 0.0
    %1190 = vmatprep.subr.mxu0 0.0
    %1191 = vmatpush1.xpose.msra.mxu0 0.0
    %1192 = vmatprep.subr.mxu0 0.0
    %1193 = vmatpush1.xpose.msra.mxu0 0.0
    %1194 = vmatprep.subr.mxu0 0.0
    %1195 = vmatpush1.xpose.msra.mxu0 0.0
    %1196 = vmatprep.subr.mxu0 0.0
    %1197 = vmatpush1.xpose.msra.mxu0 0.0
    %1198 = vmatprep.subr.mxu0 0.0
    %1199 = vmatpush1.xpose.msra.mxu0 0.0
    %1200 = vmatprep.subr.mxu0 0.0
    %1201 = vmatpush1.xpose.msra.mxu0 0.0
    %1202 = vmatprep.subr.mxu0 0.0
    %1203 = vmatpush1.xpose.msra.mxu0 0.0
    %1204 = vmatprep.subr.mxu0 0.0
    %1205 = vmatpush1.xpose.msra.mxu0 0.0
    %1206 = vmatprep.subr.mxu0 0.0
    %1207 = vmatpush1.xpose.msra.mxu0 0.0
    %1208 = vmatprep.subr.mxu0 0.0
    %1209 = vmatpush1.xpose.msra.mxu0 0.0
    %1210 = vmatprep.subr.mxu0 0.0
    %1211 = vmatpush1.xpose.msra.mxu0 0.0
    %1212 = vmatprep.subr.mxu0 0.0
    %1213 = vmatpush1.xpose.msra.mxu0 0.0
    %1214 = vmatprep.subr.mxu0 0.0
    %1215 = vmatpush1.xpose.msra.mxu0 0.0
    %1216 = vmatprep.subr.mxu0 0.0
    %1217 = vmatpush1.xpose.msra.mxu0 0.0
    %1218 = vmatprep.subr.mxu0 0.0
    %1219 = vmatpush1.xpose.msra.mxu0 0.0
    %1220 = vmatprep.subr.mxu0 0.0
    %1221 = vmatpush1.xpose.msra.mxu0 0.0
    %1222 = vmatprep.subr.mxu0 0.0
    %1223 = vmatpush1.xpose.msra.mxu0 0.0
    %1224 = vmatprep.subr.mxu0 0.0
    %1225 = vmatpush1.xpose.msra.mxu0 0.0
    %1226 = vmatprep.subr.mxu0 0.0
    %1227 = vmatpush1.xpose.msra.mxu0 0.0
    %1228 = vmatprep.subr.mxu0 0.0
    %1229 = vmatpush1.xpose.msra.mxu0 0.0
    %1230 = vmatprep.subr.mxu0 0.0
    %1231 = vmatpush1.xpose.msra.mxu0 0.0
    %1232 = vmatprep.subr.mxu0 0.0
    %1233 = vmatpush1.xpose.msra.mxu0 0.0
    %1234 = vmatprep.mubr.f32.mxu0 0.0
    %1235 = vmatmul.mubr.f32.gmra.mrb[0].mxu0 %v1166
    %v1236 = vpop.f32.mrb[0].mxu0
    %v1237 = vadd.f32 0.0, %v1236
    %v1238 = vpop.f32.mrb[0].mxu0
    %1239 = vdwg.mxu0
    %v1240 = vsel %vm149, %v1237, -inf
    %1241 = vmax.xlane.f32.xlu0 %v1240
    %v1242 = vpop.xlane.xlu0 %1241
    %v1243 = vsub.f32 %v1237, %v1242
    %v1244 = vmul.f32 %v1243, 1.442695
    %v1245 = vpow.pop %v1244
    %v1246 = vsel %vm149, %v1245, 0.0
    %1247 = vadd.xlane.f32.xlu0 %v1246
    %v1248 = vpop.xlane.xlu0 %1247
    %1249 = vrot.lane.b32.xlu0 %v141, 48
    %v1250 = vpop.permute.xlu0 %1249
    %v1253 = vsel %vm149, %v1245, 0
    %1255 = vmatprep.subr.mxu0 0.0
    %1256 = vmatpush1.msra.mxu0 %v1250
    %1257 = vmatprep.subr.mxu0 0.0
    %1258 = vmatpush1.msra.mxu0 0.0
    %1259 = vmatprep.subr.mxu0 0.0
    %1260 = vmatpush1.msra.mxu0 0.0
    %1261 = vmatprep.subr.mxu0 0.0
    %1262 = vmatpush1.msra.mxu0 0.0
    %1263 = vmatprep.subr.mxu0 0.0
    %1264 = vmatpush1.msra.mxu0 0.0
    %1265 = vmatprep.subr.mxu0 0.0
    %1266 = vmatpush1.msra.mxu0 0.0
    %1267 = vmatprep.subr.mxu0 0.0
    %1268 = vmatpush1.msra.mxu0 0.0
    %1269 = vmatprep.subr.mxu0 0.0
    %1270 = vmatpush1.msra.mxu0 0.0
    %1271 = vmatprep.subr.mxu0 0.0
    %1272 = vmatpush1.msra.mxu0 0.0
    %1273 = vmatprep.subr.mxu0 0.0
    %1274 = vmatpush1.msra.mxu0 0.0
    %1275 = vmatprep.subr.mxu0 0.0
    %1276 = vmatpush1.msra.mxu0 0.0
    %1277 = vmatprep.subr.mxu0 0.0
    %1278 = vmatpush1.msra.mxu0 0.0
    %1279 = vmatprep.subr.mxu0 0.0
    %1280 = vmatpush1.msra.mxu0 0.0
    %1281 = vmatprep.subr.mxu0 0.0
    %1282 = vmatpush1.msra.mxu0 0.0
    %1283 = vmatprep.subr.mxu0 0.0
    %1284 = vmatpush1.msra.mxu0 0.0
    %1285 = vmatprep.subr.mxu0 0.0
    %1286 = vmatpush1.msra.mxu0 0.0
    %1287 = vmatprep.subr.mxu0 0.0
    %1288 = vmatpush1.msra.mxu0 0.0
    %1289 = vmatprep.subr.mxu0 0.0
    %1290 = vmatpush1.msra.mxu0 0.0
    %1291 = vmatprep.subr.mxu0 0.0
    %1292 = vmatpush1.msra.mxu0 0.0
    %1293 = vmatprep.subr.mxu0 0.0
    %1294 = vmatpush1.msra.mxu0 0.0
    %1295 = vmatprep.subr.mxu0 0.0
    %1296 = vmatpush1.msra.mxu0 0.0
    %1297 = vmatprep.subr.mxu0 0.0
    %1298 = vmatpush1.msra.mxu0 0.0
    %1299 = vmatprep.subr.mxu0 0.0
    %1300 = vmatpush1.msra.mxu0 0.0
    %1301 = vmatprep.subr.mxu0 0.0
    %1302 = vmatpush1.msra.mxu0 0.0
    %1303 = vmatprep.subr.mxu0 0.0
    %1304 = vmatpush1.msra.mxu0 0.0
    %1305 = vmatprep.subr.mxu0 0.0
    %1306 = vmatpush1.msra.mxu0 0.0
    %1307 = vmatprep.subr.mxu0 0.0
    %1308 = vmatpush1.msra.mxu0 0.0
    %1309 = vmatprep.subr.mxu0 0.0
    %1310 = vmatpush1.msra.mxu0 0.0
    %1311 = vmatprep.subr.mxu0 0.0
    %1312 = vmatpush1.msra.mxu0 0.0
    %1313 = vmatprep.subr.mxu0 0.0
    %1314 = vmatpush1.msra.mxu0 0.0
    %1315 = vmatprep.subr.mxu0 0.0
    %1316 = vmatpush1.msra.mxu0 0.0
    %1317 = vmatprep.subr.mxu0 0.0
    %1318 = vmatpush1.msra.mxu0 0.0
    %1319 = vmatprep.mubr.f32.mxu0 0.0
    %1320 = vmatmul.mubr.f32.gmra.mrb[0].mxu0 %v1253
    %v1321 = vpop.f32.mrb[0].mxu0
    %v1322 = vadd.f32 0.0, %v1321
    %v1323 = vpop.f32.mrb[0].mxu0
    %1324 = vdwg.mxu0
    %v1325 = vrcp.pop %v1248
    %v1326 = vmul.f32 %v1322, %v1325
    %1328 = vrot.lane.b32.xlu0 %v1326, 16
    %v1329 = vpop.permute.xlu0 %1328
    %1331 = vst.msk [vmem:[#allocation2 + $0x8] sm:$0xff] %vm653, %v1329
    %1332 = vrot.lane.b32.xlu0 %v145, 104
    %v1333 = vpop.permute.xlu0 %1332
    %1334 = vrot.lane.b32.xlu0 %v141, 72
    %v1335 = vpop.permute.xlu0 %1334
    %v1336 = vsel %vm149, %v1333, 0
    %v1338 = vsel %vm149, %v1335, 0
    %1340 = vmatprep.subr.mxu0 0.0
    %1341 = vmatpush1.xpose.msra.mxu0 %v1338
    %1342 = vmatprep.subr.mxu0 0.0
    %1343 = vmatpush1.xpose.msra.mxu0 0.0
    %1344 = vmatprep.subr.mxu0 0.0
    %1345 = vmatpush1.xpose.msra.mxu0 0.0
    %1346 = vmatprep.subr.mxu0 0.0
    %1347 = vmatpush1.xpose.msra.mxu0 0.0
    %1348 = vmatprep.subr.mxu0 0.0
    %1349 = vmatpush1.xpose.msra.mxu0 0.0
    %1350 = vmatprep.subr.mxu0 0.0
    %1351 = vmatpush1.xpose.msra.mxu0 0.0
    %1352 = vmatprep.subr.mxu0 0.0
    %1353 = vmatpush1.xpose.msra.mxu0 0.0
    %1354 = vmatprep.subr.mxu0 0.0
    %1355 = vmatpush1.xpose.msra.mxu0 0.0
    %1356 = vmatprep.subr.mxu0 0.0
    %1357 = vmatpush1.xpose.msra.mxu0 0.0
    %1358 = vmatprep.subr.mxu0 0.0
    %1359 = vmatpush1.xpose.msra.mxu0 0.0
    %1360 = vmatprep.subr.mxu0 0.0
    %1361 = vmatpush1.xpose.msra.mxu0 0.0
    %1362 = vmatprep.subr.mxu0 0.0
    %1363 = vmatpush1.xpose.msra.mxu0 0.0
    %1364 = vmatprep.subr.mxu0 0.0
    %1365 = vmatpush1.xpose.msra.mxu0 0.0
    %1366 = vmatprep.subr.mxu0 0.0
    %1367 = vmatpush1.xpose.msra.mxu0 0.0
    %1368 = vmatprep.subr.mxu0 0.0
    %1369 = vmatpush1.xpose.msra.mxu0 0.0
    %1370 = vmatprep.subr.mxu0 0.0
    %1371 = vmatpush1.xpose.msra.mxu0 0.0
    %1372 = vmatprep.subr.mxu0 0.0
    %1373 = vmatpush1.xpose.msra.mxu0 0.0
    %1374 = vmatprep.subr.mxu0 0.0
    %1375 = vmatpush1.xpose.msra.mxu0 0.0
    %1376 = vmatprep.subr.mxu0 0.0
    %1377 = vmatpush1.xpose.msra.mxu0 0.0
    %1378 = vmatprep.subr.mxu0 0.0
    %1379 = vmatpush1.xpose.msra.mxu0 0.0
    %1380 = vmatprep.subr.mxu0 0.0
    %1381 = vmatpush1.xpose.msra.mxu0 0.0
    %1382 = vmatprep.subr.mxu0 0.0
    %1383 = vmatpush1.xpose.msra.mxu0 0.0
    %1384 = vmatprep.subr.mxu0 0.0
    %1385 = vmatpush1.xpose.msra.mxu0 0.0
    %1386 = vmatprep.subr.mxu0 0.0
    %1387 = vmatpush1.xpose.msra.mxu0 0.0
    %1388 = vmatprep.subr.mxu0 0.0
    %1389 = vmatpush1.xpose.msra.mxu0 0.0
    %1390 = vmatprep.subr.mxu0 0.0
    %1391 = vmatpush1.xpose.msra.mxu0 0.0
    %1392 = vmatprep.subr.mxu0 0.0
    %1393 = vmatpush1.xpose.msra.mxu0 0.0
    %1394 = vmatprep.subr.mxu0 0.0
    %1395 = vmatpush1.xpose.msra.mxu0 0.0
    %1396 = vmatprep.subr.mxu0 0.0
    %1397 = vmatpush1.xpose.msra.mxu0 0.0
    %1398 = vmatprep.subr.mxu0 0.0
    %1399 = vmatpush1.xpose.msra.mxu0 0.0
    %1400 = vmatprep.subr.mxu0 0.0
    %1401 = vmatpush1.xpose.msra.mxu0 0.0
    %1402 = vmatprep.subr.mxu0 0.0
    %1403 = vmatpush1.xpose.msra.mxu0 0.0
    %1404 = vmatprep.mubr.f32.mxu0 0.0
    %1405 = vmatmul.mubr.f32.gmra.mrb[0].mxu0 %v1336
    %v1406 = vpop.f32.mrb[0].mxu0
    %v1407 = vadd.f32 0.0, %v1406
    %v1408 = vpop.f32.mrb[0].mxu0
    %1409 = vdwg.mxu0
    %v1410 = vsel %vm149, %v1407, -inf
    %1411 = vmax.xlane.f32.xlu0 %v1410
    %v1412 = vpop.xlane.xlu0 %1411
    %v1413 = vsub.f32 %v1407, %v1412
    %v1414 = vmul.f32 %v1413, 1.442695
    %v1415 = vpow.pop %v1414
    %v1416 = vsel %vm149, %v1415, 0.0
    %1417 = vadd.xlane.f32.xlu0 %v1416
    %v1418 = vpop.xlane.xlu0 %1417
    %1419 = vrot.lane.b32.xlu0 %v141, 40
    %v1420 = vpop.permute.xlu0 %1419
    %v1423 = vsel %vm149, %v1415, 0
    %1425 = vmatprep.subr.mxu0 0.0
    %1426 = vmatpush1.msra.mxu0 %v1420
    %1427 = vmatprep.subr.mxu0 0.0
    %1428 = vmatpush1.msra.mxu0 0.0
    %1429 = vmatprep.subr.mxu0 0.0
    %1430 = vmatpush1.msra.mxu0 0.0
    %1431 = vmatprep.subr.mxu0 0.0
    %1432 = vmatpush1.msra.mxu0 0.0
    %1433 = vmatprep.subr.mxu0 0.0
    %1434 = vmatpush1.msra.mxu0 0.0
    %1435 = vmatprep.subr.mxu0 0.0
    %1436 = vmatpush1.msra.mxu0 0.0
    %1437 = vmatprep.subr.mxu0 0.0
    %1438 = vmatpush1.msra.mxu0 0.0
    %1439 = vmatprep.subr.mxu0 0.0
    %1440 = vmatpush1.msra.mxu0 0.0
    %1441 = vmatprep.subr.mxu0 0.0
    %1442 = vmatpush1.msra.mxu0 0.0
    %1443 = vmatprep.subr.mxu0 0.0
    %1444 = vmatpush1.msra.mxu0 0.0
    %1445 = vmatprep.subr.mxu0 0.0
    %1446 = vmatpush1.msra.mxu0 0.0
    %1447 = vmatprep.subr.mxu0 0.0
    %1448 = vmatpush1.msra.mxu0 0.0
    %1449 = vmatprep.subr.mxu0 0.0
    %1450 = vmatpush1.msra.mxu0 0.0
    %1451 = vmatprep.subr.mxu0 0.0
    %1452 = vmatpush1.msra.mxu0 0.0
    %1453 = vmatprep.subr.mxu0 0.0
    %1454 = vmatpush1.msra.mxu0 0.0
    %1455 = vmatprep.subr.mxu0 0.0
    %1456 = vmatpush1.msra.mxu0 0.0
    %1457 = vmatprep.subr.mxu0 0.0
    %1458 = vmatpush1.msra.mxu0 0.0
    %1459 = vmatprep.subr.mxu0 0.0
    %1460 = vmatpush1.msra.mxu0 0.0
    %1461 = vmatprep.subr.mxu0 0.0
    %1462 = vmatpush1.msra.mxu0 0.0
    %1463 = vmatprep.subr.mxu0 0.0
    %1464 = vmatpush1.msra.mxu0 0.0
    %1465 = vmatprep.subr.mxu0 0.0
    %1466 = vmatpush1.msra.mxu0 0.0
    %1467 = vmatprep.subr.mxu0 0.0
    %1468 = vmatpush1.msra.mxu0 0.0
    %1469 = vmatprep.subr.mxu0 0.0
    %1470 = vmatpush1.msra.mxu0 0.0
    %1471 = vmatprep.subr.mxu0 0.0
    %1472 = vmatpush1.msra.mxu0 0.0
    %1473 = vmatprep.subr.mxu0 0.0
    %1474 = vmatpush1.msra.mxu0 0.0
    %1475 = vmatprep.subr.mxu0 0.0
    %1476 = vmatpush1.msra.mxu0 0.0
    %1477 = vmatprep.subr.mxu0 0.0
    %1478 = vmatpush1.msra.mxu0 0.0
    %1479 = vmatprep.subr.mxu0 0.0
    %1480 = vmatpush1.msra.mxu0 0.0
    %1481 = vmatprep.subr.mxu0 0.0
    %1482 = vmatpush1.msra.mxu0 0.0
    %1483 = vmatprep.subr.mxu0 0.0
    %1484 = vmatpush1.msra.mxu0 0.0
    %1485 = vmatprep.subr.mxu0 0.0
    %1486 = vmatpush1.msra.mxu0 0.0
    %1487 = vmatprep.subr.mxu0 0.0
    %1488 = vmatpush1.msra.mxu0 0.0
    %1489 = vmatprep.mubr.f32.mxu0 0.0
    %1490 = vmatmul.mubr.f32.gmra.mrb[0].mxu0 %v1423
    %v1491 = vpop.f32.mrb[0].mxu0
    %v1492 = vadd.f32 0.0, %v1491
    %v1493 = vpop.f32.mrb[0].mxu0
    %1494 = vdwg.mxu0
    %v1495 = vrcp.pop %v1418
    %v1496 = vmul.f32 %v1492, %v1495
    %1498 = vrot.lane.b32.xlu0 %v1496, 24
    %v1499 = vpop.permute.xlu0 %1498
    %1501 = vst.msk [vmem:[#allocation2 + $0x8] sm:$0xff] %vm824, %v1499
    %v1502 = vld [vmem:[#allocation2] sm:$0xff]
    %v1503 = vld [vmem:[#allocation2 + $0x8] sm:$0xff]
    %v1504 = vld [vmem:[#allocation6] sm:$0xff]
    %v1505 = vld [vmem:[#allocation6 + $0x8] sm:$0xff]
    %v1506 = vld [vmem:[#allocation6 + $0x10] sm:$0xff]
    %v1507 = vld [vmem:[#allocation6 + $0x18] sm:$0xff]
    %v1508 = vld [vmem:[%s4] sm:$0x1]
    %v1510 = vlaneseq
    %v1511 = vshrl.u32 %v1510, 7
    %v1512 = vsub.s32 0, %v1511
    %v1513 = vrot.slane %v1508, %v1512
    %v1516 = vsel %vm62, %v1502, 0
    %v1519 = vsel %vm62, %v1503, 0
    %1521 = vmatprep.subr.mxu0 0.0
    %1522 = vmatpush1.msra.mxu0 %v1504
    %1523 = vmatprep.subr.mxu0 0.0
    %1524 = vmatpush1.msra.mxu0 %v1505
    %1525 = vmatprep.subr.mxu0 0.0
    %1526 = vmatpush1.msra.mxu0 %v1506
    %1527 = vmatprep.subr.mxu0 0.0
    %1528 = vmatpush1.msra.mxu0 %v1507
    %1529 = vmatprep.subr.mxu0 0.0
    %1530 = vmatpush1.msra.mxu0 0.0
    %1531 = vmatprep.subr.mxu0 0.0
    %1532 = vmatpush1.msra.mxu0 0.0
    %1533 = vmatprep.subr.mxu0 0.0
    %1534 = vmatpush1.msra.mxu0 0.0
    %1535 = vmatprep.subr.mxu0 0.0
    %1536 = vmatpush1.msra.mxu0 0.0
    %1537 = vmatprep.subr.mxu0 0.0
    %1538 = vmatpush1.msra.mxu0 0.0
    %1539 = vmatprep.subr.mxu0 0.0
    %1540 = vmatpush1.msra.mxu0 0.0
    %1541 = vmatprep.subr.mxu0 0.0
    %1542 = vmatpush1.msra.mxu0 0.0
    %1543 = vmatprep.subr.mxu0 0.0
    %1544 = vmatpush1.msra.mxu0 0.0
    %1545 = vmatprep.subr.mxu0 0.0
    %1546 = vmatpush1.msra.mxu0 0.0
    %1547 = vmatprep.subr.mxu0 0.0
    %1548 = vmatpush1.msra.mxu0 0.0
    %1549 = vmatprep.subr.mxu0 0.0
    %1550 = vmatpush1.msra.mxu0 0.0
    %1551 = vmatprep.subr.mxu0 0.0
    %1552 = vmatpush1.msra.mxu0 0.0
    %1553 = vmatprep.subr.mxu0 0.0
    %1554 = vmatpush1.msra.mxu0 0.0
    %1555 = vmatprep.subr.mxu0 0.0
    %1556 = vmatpush1.msra.mxu0 0.0
    %1557 = vmatprep.subr.mxu0 0.0
    %1558 = vmatpush1.msra.mxu0 0.0
    %1559 = vmatprep.subr.mxu0 0.0
    %1560 = vmatpush1.msra.mxu0 0.0
    %1561 = vmatprep.subr.mxu0 0.0
    %1562 = vmatpush1.msra.mxu0 0.0
    %1563 = vmatprep.subr.mxu0 0.0
    %1564 = vmatpush1.msra.mxu0 0.0
    %1565 = vmatprep.subr.mxu0 0.0
    %1566 = vmatpush1.msra.mxu0 0.0
    %1567 = vmatprep.subr.mxu0 0.0
    %1568 = vmatpush1.msra.mxu0 0.0
    %1569 = vmatprep.subr.mxu0 0.0
    %1570 = vmatpush1.msra.mxu0 0.0
    %1571 = vmatprep.subr.mxu0 0.0
    %1572 = vmatpush1.msra.mxu0 0.0
    %1573 = vmatprep.subr.mxu0 0.0
    %1574 = vmatpush1.msra.mxu0 0.0
    %1575 = vmatprep.subr.mxu0 0.0
    %1576 = vmatpush1.msra.mxu0 0.0
    %1577 = vmatprep.subr.mxu0 0.0
    %1578 = vmatpush1.msra.mxu0 0.0
    %1579 = vmatprep.subr.mxu0 0.0
    %1580 = vmatpush1.msra.mxu0 0.0
    %1581 = vmatprep.subr.mxu0 0.0
    %1582 = vmatpush1.msra.mxu0 0.0
    %1583 = vmatprep.subr.mxu0 0.0
    %1584 = vmatpush1.msra.mxu0 0.0
    %1585 = vmatprep.mubr.f32.mxu0 0.0
    %1586 = vmatmul.mubr.f32.gmra.mrb[0].mxu0 %v1516
    %v1587 = vpop.f32.mrb[0].mxu0
    %v1588 = vadd.f32 %v1513, %v1587
    %v1589 = vpop.f32.mrb[0].mxu0
    %1590 = vmatprep.mubr.f32.mxu0 0.0
    %1591 = vmatmul.mubr.f32.gmra.mrb[0].mxu0 %v1519
    %v1592 = vpop.f32.mrb[0].mxu0
    %v1593 = vadd.f32 %v1513, %v1592
    %v1594 = vpop.f32.mrb[0].mxu0
    %1595 = vdwg.mxu0
    %1596 = vst.msk [vmem:[#allocation8] sm:$0xff] %vm62, %v1588
    %1597 = vst.msk [vmem:[#allocation8 + $0x8] sm:$0xff] %vm62, %v1593
    // Predicated region
    $region30: #{causal_self_attention.1} parent=1 // pred_check
      _
    $region31: #{causal_self_attention.1} parent=1 // pred_check_branch
      %1599 = sbr.rel (0) target = $region33
    $region32: #{causal_self_attention.1} parent=1 // pred_region
      %s1601 = ssub.s32 256, 256
      %1602 = vsyncadd [#allocation5], %s1601
      %s1603 = sshll.u32 [#allocation8], 4
      %s1604 = int_to_ptr.vmem [resolvable:$true] %s1603
      %1609 = dma.vmem_to_hbm [thread:$0]  %s1604, 256, %s5, [#allocation5], 128, 128, 8
    $region33: #{causal_self_attention.1} parent=1 // pred_fallthru
      _
    // Predicated region
    $region34: #{causal_self_attention.1} parent=1 // pred_check
      _
    $region35: #{causal_self_attention.1} parent=1 // pred_check_branch
      %1611 = sbr.rel (0) target = $region37
    $region36: #{causal_self_attention.1} parent=1 // pred_region
      %1612 = dma.done [#allocation5], 256
    $region37: #{causal_self_attention.1} parent=1 // pred_fallthru
      _
    %1613 = vsyncpa [#allocation4], 1
    %1614 = vsyncpa [#allocation7], 1
    %1615 = vsyncpa [#allocation5], 1

</llo_original>
